<compile_context>
chip_gen: v5e
topology: v5e:2x2
jax: 0.10.0
libtpu: 0.0.40
codegen_flags: <defaults>
</compile_context>

<pallas_src>
import jax
import jax.numpy as jnp
from jax.experimental import pallas as pl
from jax.experimental.pallas import tpu as pltpu

_BN_EPS = 1e-5


# ----------------------------------------------------------------------------
# One Conv2dSame(3x3) + BatchNorm(batch stats) + ReLU on the (row, lane) layout.
#   lhs_rows  : list of 3 (B*H, K) bf16 arrays, one per kh (row-shifted input)
#   w_ref     : (3, K, W*Cout) bf16 banded weight matrices ('same' w-pad folded)
#   bias_ref  : (1, W*Cout) f32   conv bias replicated over columns
#   gamma_ref, beta_ref : (1, Cout) f32  BN affine parameters
#   sel_ref   : (W*Cout, Cout) f32  0/1 lane->channel reduction matrix
#   selT_ref  : (Cout, W*Cout) f32  channel->lane broadcast matrix
#   n         : number of samples per channel for batch statistics (B*H*W)
# Returns the normalized activation as a (B*H, W*Cout) f32 value.
# ----------------------------------------------------------------------------
def _conv_bn_relu(lhs_rows, w_ref, bias_ref, gamma_ref, beta_ref,
                  sel_ref, selT_ref, n):
    WC = w_ref.shape[-1]
    BH = lhs_rows[0].shape[0]

    # 3x3 'same' conv = sum over kh of (B*H, K) @ (K, W*Cout) on the MXU.
    acc = jnp.zeros((BH, WC), jnp.float32)
    for kh in range(3):
        acc = acc + jnp.dot(lhs_rows[kh], w_ref[kh],
                            preferred_element_type=jnp.float32)
    acc = acc + bias_ref[...]

    # One-pass BatchNorm statistics (biased variance, eps=1e-5, train mode).
    col_sum = jnp.sum(acc, axis=0, keepdims=True)               # (1, WC)
    col_sq = jnp.sum(acc * acc, axis=0, keepdims=True)          # (1, WC)
    ch_sum = jnp.dot(col_sum, sel_ref[...],
                     preferred_element_type=jnp.float32)        # (1, Cout)
    ch_sq = jnp.dot(col_sq, sel_ref[...],
                    preferred_element_type=jnp.float32)         # (1, Cout)
    mean = ch_sum / n
    var = jnp.maximum(ch_sq / n - mean * mean, 0.0)
    scale = gamma_ref[...] * jax.lax.rsqrt(var + _BN_EPS)       # (1, Cout)
    shift = beta_ref[...] - mean * scale
    # Broadcast per-channel scale/shift back onto the (w, c) lane layout.
    scale_l = jnp.dot(scale, selT_ref[...],
                      preferred_element_type=jnp.float32)       # (1, WC)
    shift_l = jnp.dot(shift, selT_ref[...],
                      preferred_element_type=jnp.float32)
    return jnp.maximum(acc * scale_l + shift_l, 0.0)


# ----------------------------------------------------------------------------
# Fused kernel: [conv+BN+ReLU] x 2 + row half of the 2x2/2 max pool.
#   xrows_ref : (B, H+2, W*Cin) bf16   h-zero-padded input, (w, ch) on lanes
#   w1/w2     : (3, W*Cin, W*Cout) / (3, W*Cout, W*Cout) bf16 banded weights
#   idx_ref   : (B*H, W*Cout) int32    flat spatial index h*W + w per element
#   xskip_ref : (B*H, W*Cout) f32      activation before pooling (skip tensor)
#   rv_ref    : (B*Ho, 1, W*Cout) f32  max over each row pair
#   ri_ref    : (B*Ho, 1, W*Cout) i32  flat index of that max
#   pad_ref   : (B, H+2, W*Cout) f32   VMEM staging of layer-1 activation
# ----------------------------------------------------------------------------
def _encoder_block_kernel(xrows_ref, w1_ref, b1_ref, g1_ref, bt1_ref,
                          w2_ref, b2_ref, g2_ref, bt2_ref,
                          sel_ref, selT_ref, idx_ref,
                          xskip_ref, rv_ref, ri_ref, pad_ref):
    B, Hp, K1 = xrows_ref.shape
    H = Hp - 2
    BH = B * H
    WC = w1_ref.shape[-1]
    Cout = g1_ref.shape[-1]
    W = WC // Cout
    n = B * H * W                      # samples per channel for batch stats

    # ----- layer 1: conv + BN + ReLU -------------------------------------
    lhs1 = [xrows_ref[:, kh:kh + H, :].reshape(BH, K1) for kh in range(3)]
    act1 = _conv_bn_relu(lhs1, w1_ref, b1_ref, g1_ref, bt1_ref,
                         sel_ref, selT_ref, n)

    # Stage the intermediate activation in VMEM with zero rows at h=-1 and
    # h=H per batch image (never leaves VMEM).
    pad_ref[...] = jnp.zeros_like(pad_ref)
    pad_ref[:, 1:H + 1, :] = act1.reshape(B, H, WC)

    # ----- layer 2: conv + BN + ReLU -------------------------------------
    lhs2 = [pad_ref[:, kh:kh + H, :].reshape(BH, WC).astype(jnp.bfloat16)
            for kh in range(3)]
    act2 = _conv_bn_relu(lhs2, w2_ref, b2_ref, g2_ref, bt2_ref,
                         sel_ref, selT_ref, n)
    xskip_ref[...] = act2.astype(xskip_ref.dtype)

    # ----- fused row (h) half of the 2x2/2 max pool -----------------------
    # Ties keep the smaller row (PyTorch first-max rule).
    # TODO(synk): NaN inputs are not propagated like torch.max_pool2d.
    idx0 = idx_ref[...]
    v3 = act2.reshape(BH // 2, 2, WC)
    i3 = idx0.reshape(BH // 2, 2, WC)
    tv, bv = v3[:, 0:1, :], v3[:, 1:2, :]
    ti, bi = i3[:, 0:1, :], i3[:, 1:2, :]
    take = bv > tv
    rv_ref[...] = jnp.where(take, bv, tv)
    ri_ref[...] = jnp.where(take, bi, ti)


# ----------------------------------------------------------------------------
# JAX-side glue: weight repacking, h padding, layout reshapes, pool finalize.
# ----------------------------------------------------------------------------
def _banded_conv_weights(w_oihw, W):
    """(Cout,Cin,3,3) torch weights -> (3, W*Cin, W*Cout) banded matrices.

    M[kh, wp*Cin+ci, w*Cout+co] = w[co, ci, kh, kw] for wp = w + kw - 1 when
    0 <= wp < W (the 'same' padding along w is folded into the matrix), so
    summing over kh of (input row h+kh-1) @ M[kh] yields the 3x3 'same' conv
    output row h laid out as (W*Cout,) with channel minor.
    """
    Cout, Cin, KH, KW = w_oihw.shape
    wt = jnp.transpose(w_oihw, (2, 3, 1, 0))            # (KH, KW, Cin, Cout)
    M = jnp.zeros((KH, W, Cin, W, Cout), w_oihw.dtype)
    for kw in range(KW):
        lo = max(0, 1 - kw)           # output cols with an in-range input col
        hi = min(W, W + 1 - kw)
        ws = jnp.arange(lo, hi)
        wps = ws + (kw - 1)
        M = M.at[:, wps, :, ws, :].set(wt[:, kw, :, :])
    return M.reshape(KH, W * Cin, W * Cout)


def encoder_block_forward(x_nchw, params):
    """EncoderBlock.forward: returns (y, x_skip, indices) in NCHW."""
    x = jnp.transpose(x_nchw, (0, 2, 3, 1))             # NCHW -> NHWC
    B, H, W, Cin = x.shape
    Cout = params["w1"].shape[0]
    assert H % 2 == 0 and W % 2 == 0, "2x2/2 max pool needs even H, W"
    Ho, Wo = H // 2, W // 2
    WC = W * Cout

    # Pack operands: h-zero-padded input rows (bf16), banded weights (bf16),
    # lane-replicated biases, BN params, 0/1 selector matrices, flat indices.
    xp = jnp.pad(x, ((0, 0), (1, 1), (0, 0), (0, 0)))
    xrows = xp.reshape(B, H + 2, W * Cin).astype(jnp.bfloat16)
    w1m = _banded_conv_weights(params["w1"], W).astype(jnp.bfloat16)
    w2m = _banded_conv_weights(params["w2"], W).astype(jnp.bfloat16)
    sel = jnp.tile(jnp.eye(Cout, dtype=jnp.float32), (W, 1))    # (WC, Cout)
    selT = jnp.transpose(sel)                                   # (Cout, WC)
    tile_bias = lambda b: jnp.tile(
        b.astype(jnp.float32).reshape(1, Cout), (1, W))
    b1l, b2l = tile_bias(params["b1"]), tile_bias(params["b2"])
    g1 = params["g1"].astype(jnp.float32).reshape(1, Cout)
    bt1 = params["bt1"].astype(jnp.float32).reshape(1, Cout)
    g2 = params["g2"].astype(jnp.float32).reshape(1, Cout)
    bt2 = params["bt2"].astype(jnp.float32).reshape(1, Cout)
    # Flat PyTorch-style spatial index h*W + w of every element (per b, c).
    h_row = (jnp.arange(B * H, dtype=jnp.int32) % H)[:, None]
    w_col = (jnp.arange(WC, dtype=jnp.int32) // Cout)[None, :]
    idx_elem = h_row * W + w_col                                 # (B*H, WC)

    vmem = pl.BlockSpec(memory_space=pltpu.MemorySpace.VMEM)
    x_skip, rv, ri = pl.pallas_call(
        _encoder_block_kernel,
        out_shape=(jax.ShapeDtypeStruct((B * H, WC), jnp.float32),
                   jax.ShapeDtypeStruct((B * Ho, 1, WC), jnp.float32),
                   jax.ShapeDtypeStruct((B * Ho, 1, WC), jnp.int32)),
        in_specs=[vmem] * 12,
        out_specs=(vmem, vmem, vmem),
        scratch_shapes=[pltpu.VMEM((B, H + 2, WC), jnp.float32)],
    )(xrows, w1m, b1l, g1, bt1, w2m, b2l, g2, bt2, sel, selT, idx_elem)

    x_skip = x_skip.reshape(B, H, W, Cout)
    # Finish the column (w) half of the pool on the tiny row-pooled candidates
    # (pure elementwise / layout work; the activation itself is never re-read).
    rv = rv.reshape(B, Ho, W, Cout)
    ri = ri.reshape(B, Ho, W, Cout)
    ve, vo = rv[:, :, 0::2, :], rv[:, :, 1::2, :]
    ie, io = ri[:, :, 0::2, :], ri[:, :, 1::2, :]
    take = (vo > ve) | ((vo == ve) & (io < ie))   # PyTorch returns the 1st max
    y = jnp.where(take, vo, ve)
    idx = jnp.where(take, io, ie)

    to_nchw = lambda t: jnp.transpose(t, (0, 3, 1, 2))
    # TODO(synk): PyTorch returns int64 pool indices; int32 is used on TPU.
    return to_nchw(y), to_nchw(x_skip), to_nchw(idx)


# ----------------------------------------------------------------------------
# Pure-JAX reference (mirrors the kernel's bf16 operand rounding) for checking.
# ----------------------------------------------------------------------------
def _reference_forward(x_nchw, params):
    def conv_bn_relu_ref(x, w, b, g, bt):
        B, H, W, _ = x.shape
        Cout = w.shape[0]
        xb = x.astype(jnp.bfloat16).astype(jnp.float32)
        wt = jnp.transpose(w.astype(jnp.bfloat16).astype(jnp.float32),
                           (2, 3, 1, 0))                        # (3,3,Cin,Cout)
        xp = jnp.pad(xb, ((0, 0), (1, 1), (1, 1), (0, 0)))
        acc = jnp.zeros((B, H, W, Cout), jnp.float32)
        for kh in range(3):
            for kw in range(3):
                acc = acc + jnp.einsum('bhwc,cd->bhwd',
                                       xp[:, kh:kh + H, kw:kw + W, :],
                                       wt[kh, kw],
                                       preferred_element_type=jnp.float32)
        acc = acc + b
        mean = acc.mean(axis=(0, 1, 2))
        var = ((acc - mean) ** 2).mean(axis=(0, 1, 2))
        out = (acc - mean) * jax.lax.rsqrt(var + _BN_EPS) * g + bt
        return jnp.maximum(out, 0.0)

    x = jnp.transpose(x_nchw, (0, 2, 3, 1))
    h1 = conv_bn_relu_ref(x, params["w1"], params["b1"],
                          params["g1"], params["bt1"])
    h1 = h1.astype(jnp.bfloat16).astype(jnp.float32)   # kernel feeds bf16 lhs
    h2 = conv_bn_relu_ref(h1, params["w2"], params["b2"],
                          params["g2"], params["bt2"])
    B, H, W, C = h2.shape
    y = h2.reshape(B, H // 2, 2, W // 2, 2, C).max(axis=(2, 4))
    to_nchw = lambda t: jnp.transpose(t, (0, 3, 1, 2))
    return to_nchw(y), to_nchw(h2)


if __name__ == "__main__":
    B, Cin, H, W = 2, 4, 16, 16
    Cout = 8

    key = jax.random.PRNGKey(0)
    k_x, k_w1, k_b1, k_w2, k_b2 = jax.random.split(key, 5)

    x = jax.random.normal(k_x, (B, Cin, H, W), jnp.float32)
    w1 = jax.random.normal(k_w1, (Cout, Cin, 3, 3), jnp.float32) * 0.2
    b1 = jax.random.normal(k_b1, (Cout,), jnp.float32) * 0.1
    w2 = jax.random.normal(k_w2, (Cout, Cout, 3, 3), jnp.float32) * 0.2
    b2 = jax.random.normal(k_b2, (Cout,), jnp.float32) * 0.1

    params = {
        "w1": w1, "b1": b1,
        "g1": jnp.ones((Cout,), jnp.float32),
        "bt1": jnp.zeros((Cout,), jnp.float32),
        "w2": w2, "b2": b2,
        "g2": jnp.ones((Cout,), jnp.float32),
        "bt2": jnp.zeros((Cout,), jnp.float32),
    }

    fwd = jax.jit(encoder_block_forward)
    y, x_skip, indices = fwd(x, params)
    jax.block_until_ready((y, x_skip, indices))

    assert y.shape == (B, Cout, H // 2, W // 2)
    assert x_skip.shape == (B, Cout, H, W)
    assert indices.shape == (B, Cout, H // 2, W // 2)

    # Index self-consistency: gathering x_skip at `indices` reproduces y.
    xs_flat = x_skip.reshape(B, Cout, H * W)
    gathered = jnp.take_along_axis(
        xs_flat, indices.reshape(B, Cout, -1), axis=2).reshape(y.shape)
    assert bool(jnp.all(gathered == y)), "pool indices inconsistent with values"

    # Numeric check against a pure-JAX reference (same bf16 operand rounding).
    ref_y, ref_x = _reference_forward(x, params)
    assert bool(jnp.allclose(x_skip, ref_x, rtol=2e-2, atol=2e-2)), \
        "x_skip mismatch vs reference"
    assert bool(jnp.allclose(y, ref_y, rtol=2e-2, atol=2e-2)), \
        "pooled output mismatch vs reference"

    print("KERNEL_OK")
</pallas_src>

<mosaic_0001>
module attributes {stable_mosaic.version = 11 : i64} {
  func.func @_encoder_block_kernel(%arg0: memref<2x18x64xbf16, #tpu.memory_space<vmem>>, %arg1: memref<3x64x128xbf16, #tpu.memory_space<vmem>>, %arg2: memref<1x128xf32, #tpu.memory_space<vmem>>, %arg3: memref<1x8xf32, #tpu.memory_space<vmem>>, %arg4: memref<1x8xf32, #tpu.memory_space<vmem>>, %arg5: memref<3x128x128xbf16, #tpu.memory_space<vmem>>, %arg6: memref<1x128xf32, #tpu.memory_space<vmem>>, %arg7: memref<1x8xf32, #tpu.memory_space<vmem>>, %arg8: memref<1x8xf32, #tpu.memory_space<vmem>>, %arg9: memref<128x8xf32, #tpu.memory_space<vmem>>, %arg10: memref<8x128xf32, #tpu.memory_space<vmem>>, %arg11: memref<32x128xi32, #tpu.memory_space<vmem>>, %arg12: memref<32x128xf32, #tpu.memory_space<vmem>>, %arg13: memref<16x1x128xf32, #tpu.memory_space<vmem>>, %arg14: memref<16x1x128xi32, #tpu.memory_space<vmem>>, %arg15: memref<2x18x128xf32, #tpu.memory_space<vmem>>) attributes {dimension_semantics = [], scalar_prefetch = 0 : i64, scratch_operands = 1 : i64, tpu.core_type = #tpu.core_type<tc>} {
    %c0 = arith.constant 0 : index
    %c0_0 = arith.constant 0 : index
    %c0_1 = arith.constant 0 : index
    %0 = vector.load %arg0[%c0, %c0_0, %c0_1] : memref<2x18x64xbf16, #tpu.memory_space<vmem>>, vector<2x16x64xbf16>
    %1 = vector.shape_cast %0 : vector<2x16x64xbf16> to vector<32x64xbf16>
    %c0_2 = arith.constant 0 : index
    %c1 = arith.constant 1 : index
    %c0_3 = arith.constant 0 : index
    %2 = vector.load %arg0[%c0_2, %c1, %c0_3] : memref<2x18x64xbf16, #tpu.memory_space<vmem>>, vector<2x16x64xbf16>
    %3 = vector.shape_cast %2 : vector<2x16x64xbf16> to vector<32x64xbf16>
    %c0_4 = arith.constant 0 : index
    %c2 = arith.constant 2 : index
    %c0_5 = arith.constant 0 : index
    %4 = vector.load %arg0[%c0_4, %c2, %c0_5] : memref<2x18x64xbf16, #tpu.memory_space<vmem>>, vector<2x16x64xbf16>
    %5 = vector.shape_cast %4 : vector<2x16x64xbf16> to vector<32x64xbf16>
    %cst = arith.constant 0.000000e+00 : f32
    %6 = vector.broadcast %cst : f32 to vector<32x128xf32>
    %c0_6 = arith.constant 0 : index
    %c0_7 = arith.constant 0 : index
    %c0_8 = arith.constant 0 : index
    %7 = vector.load %arg1[%c0_6, %c0_7, %c0_8] : memref<3x64x128xbf16, #tpu.memory_space<vmem>>, vector<1x64x128xbf16>
    %8 = vector.shape_cast %7 : vector<1x64x128xbf16> to vector<64x128xbf16>
    %cst_9 = arith.constant dense<0.000000e+00> : vector<32x128xf32>
    %9 = tpu.matmul %1, %8, %cst_9 {dimension_numbers = #tpu.dot_dimension_numbers<[1], [0], [0], [1], [0, 0, 1, 1], [], []>} : vector<32x64xbf16>, vector<64x128xbf16>, vector<32x128xf32> -> vector<32x128xf32>
    %10 = arith.addf %6, %9 : vector<32x128xf32>
    %c1_10 = arith.constant 1 : index
    %c0_11 = arith.constant 0 : index
    %c0_12 = arith.constant 0 : index
    %11 = vector.load %arg1[%c1_10, %c0_11, %c0_12] : memref<3x64x128xbf16, #tpu.memory_space<vmem>>, vector<1x64x128xbf16>
    %12 = vector.shape_cast %11 : vector<1x64x128xbf16> to vector<64x128xbf16>
    %cst_13 = arith.constant dense<0.000000e+00> : vector<32x128xf32>
    %13 = tpu.matmul %3, %12, %cst_13 {dimension_numbers = #tpu.dot_dimension_numbers<[1], [0], [0], [1], [0, 0, 1, 1], [], []>} : vector<32x64xbf16>, vector<64x128xbf16>, vector<32x128xf32> -> vector<32x128xf32>
    %14 = arith.addf %10, %13 : vector<32x128xf32>
    %c2_14 = arith.constant 2 : index
    %c0_15 = arith.constant 0 : index
    %c0_16 = arith.constant 0 : index
    %15 = vector.load %arg1[%c2_14, %c0_15, %c0_16] : memref<3x64x128xbf16, #tpu.memory_space<vmem>>, vector<1x64x128xbf16>
    %16 = vector.shape_cast %15 : vector<1x64x128xbf16> to vector<64x128xbf16>
    %cst_17 = arith.constant dense<0.000000e+00> : vector<32x128xf32>
    %17 = tpu.matmul %5, %16, %cst_17 {dimension_numbers = #tpu.dot_dimension_numbers<[1], [0], [0], [1], [0, 0, 1, 1], [], []>} : vector<32x64xbf16>, vector<64x128xbf16>, vector<32x128xf32> -> vector<32x128xf32>
    %18 = arith.addf %14, %17 : vector<32x128xf32>
    %c0_18 = arith.constant 0 : index
    %c0_19 = arith.constant 0 : index
    %19 = vector.load %arg2[%c0_18, %c0_19] : memref<1x128xf32, #tpu.memory_space<vmem>>, vector<1x128xf32>
    %20 = vector.broadcast %19 : vector<1x128xf32> to vector<32x128xf32>
    %21 = arith.addf %18, %20 : vector<32x128xf32>
    %cst_20 = arith.constant dense<0.000000e+00> : vector<128xf32>
    %22 = vector.multi_reduction <add>, %21, %cst_20 [0] : vector<32x128xf32> to vector<128xf32>
    %23 = vector.shape_cast %22 : vector<128xf32> to vector<1x128xf32>
    %24 = arith.mulf %21, %21 : vector<32x128xf32>
    %cst_21 = arith.constant dense<0.000000e+00> : vector<128xf32>
    %25 = vector.multi_reduction <add>, %24, %cst_21 [0] : vector<32x128xf32> to vector<128xf32>
    %26 = vector.shape_cast %25 : vector<128xf32> to vector<1x128xf32>
    %c0_22 = arith.constant 0 : index
    %c0_23 = arith.constant 0 : index
    %27 = vector.load %arg9[%c0_22, %c0_23] : memref<128x8xf32, #tpu.memory_space<vmem>>, vector<128x8xf32>
    %cst_24 = arith.constant dense<0.000000e+00> : vector<1x8xf32>
    %28 = tpu.matmul %23, %27, %cst_24 {dimension_numbers = #tpu.dot_dimension_numbers<[1], [0], [0], [1], [0, 0, 1, 1], [], []>} : vector<1x128xf32>, vector<128x8xf32>, vector<1x8xf32> -> vector<1x8xf32>
    %c0_25 = arith.constant 0 : index
    %c0_26 = arith.constant 0 : index
    %29 = vector.load %arg9[%c0_25, %c0_26] : memref<128x8xf32, #tpu.memory_space<vmem>>, vector<128x8xf32>
    %cst_27 = arith.constant dense<0.000000e+00> : vector<1x8xf32>
    %30 = tpu.matmul %26, %29, %cst_27 {dimension_numbers = #tpu.dot_dimension_numbers<[1], [0], [0], [1], [0, 0, 1, 1], [], []>} : vector<1x128xf32>, vector<128x8xf32>, vector<1x8xf32> -> vector<1x8xf32>
    %cst_28 = arith.constant 5.120000e+02 : f32
    %31 = vector.broadcast %cst_28 : f32 to vector<1x8xf32>
    %32 = arith.divf %28, %31 : vector<1x8xf32>
    %cst_29 = arith.constant 5.120000e+02 : f32
    %33 = vector.broadcast %cst_29 : f32 to vector<1x8xf32>
    %34 = arith.divf %30, %33 : vector<1x8xf32>
    %35 = arith.mulf %32, %32 : vector<1x8xf32>
    %36 = arith.subf %34, %35 : vector<1x8xf32>
    %cst_30 = arith.constant 0.000000e+00 : f32
    %37 = vector.broadcast %cst_30 : f32 to vector<1x8xf32>
    %38 = arith.maximumf %36, %37 : vector<1x8xf32>
    %c0_31 = arith.constant 0 : index
    %c0_32 = arith.constant 0 : index
    %39 = vector.load %arg3[%c0_31, %c0_32] : memref<1x8xf32, #tpu.memory_space<vmem>>, vector<1x8xf32>
    %cst_33 = arith.constant 9.99999974E-6 : f32
    %40 = vector.broadcast %cst_33 : f32 to vector<1x8xf32>
    %41 = arith.addf %38, %40 : vector<1x8xf32>
    %42 = math.rsqrt %41 : vector<1x8xf32>
    %43 = arith.mulf %39, %42 : vector<1x8xf32>
    %c0_34 = arith.constant 0 : index
    %c0_35 = arith.constant 0 : index
    %44 = vector.load %arg4[%c0_34, %c0_35] : memref<1x8xf32, #tpu.memory_space<vmem>>, vector<1x8xf32>
    %45 = arith.mulf %32, %43 : vector<1x8xf32>
    %46 = arith.subf %44, %45 : vector<1x8xf32>
    %c0_36 = arith.constant 0 : index
    %c0_37 = arith.constant 0 : index
    %47 = vector.load %arg10[%c0_36, %c0_37] : memref<8x128xf32, #tpu.memory_space<vmem>>, vector<8x128xf32>
    %cst_38 = arith.constant dense<0.000000e+00> : vector<1x128xf32>
    %48 = tpu.matmul %43, %47, %cst_38 {dimension_numbers = #tpu.dot_dimension_numbers<[1], [0], [0], [1], [0, 0, 1, 1], [], []>} : vector<1x8xf32>, vector<8x128xf32>, vector<1x128xf32> -> vector<1x128xf32>
    %c0_39 = arith.constant 0 : index
    %c0_40 = arith.constant 0 : index
    %49 = vector.load %arg10[%c0_39, %c0_40] : memref<8x128xf32, #tpu.memory_space<vmem>>, vector<8x128xf32>
    %cst_41 = arith.constant dense<0.000000e+00> : vector<1x128xf32>
    %50 = tpu.matmul %46, %49, %cst_41 {dimension_numbers = #tpu.dot_dimension_numbers<[1], [0], [0], [1], [0, 0, 1, 1], [], []>} : vector<1x8xf32>, vector<8x128xf32>, vector<1x128xf32> -> vector<1x128xf32>
    %51 = vector.broadcast %48 : vector<1x128xf32> to vector<32x128xf32>
    %52 = arith.mulf %21, %51 : vector<32x128xf32>
    %53 = vector.broadcast %50 : vector<1x128xf32> to vector<32x128xf32>
    %54 = arith.addf %52, %53 : vector<32x128xf32>
    %cst_42 = arith.constant 0.000000e+00 : f32
    %55 = vector.broadcast %cst_42 : f32 to vector<32x128xf32>
    %56 = arith.maximumf %54, %55 : vector<32x128xf32>
    %cst_43 = arith.constant 0.000000e+00 : f32
    %57 = vector.broadcast %cst_43 : f32 to vector<2x18x128xf32>
    %c0_44 = arith.constant 0 : index
    %c0_45 = arith.constant 0 : index
    %c0_46 = arith.constant 0 : index
    %58 = vector.load %arg15[%c0_44, %c0_45, %c0_46] : memref<2x18x128xf32, #tpu.memory_space<vmem>>, vector<2x18x128xf32>
    tpu.vector_store %arg15[%c0_44, %c0_45, %c0_46], %57 {strides = array<i32>} : memref<2x18x128xf32, #tpu.memory_space<vmem>>, vector<2x18x128xf32>,
    %59 = vector.shape_cast %56 : vector<32x128xf32> to vector<2x16x128xf32>
    %c0_47 = arith.constant 0 : index
    %c1_48 = arith.constant 1 : index
    %c0_49 = arith.constant 0 : index
    %60 = vector.load %arg15[%c0_47, %c1_48, %c0_49] : memref<2x18x128xf32, #tpu.memory_space<vmem>>, vector<2x16x128xf32>
    tpu.vector_store %arg15[%c0_47, %c1_48, %c0_49], %59 {strides = array<i32>} : memref<2x18x128xf32, #tpu.memory_space<vmem>>, vector<2x16x128xf32>,
    %c0_50 = arith.constant 0 : index
    %c0_51 = arith.constant 0 : index
    %c0_52 = arith.constant 0 : index
    %61 = vector.load %arg15[%c0_50, %c0_51, %c0_52] : memref<2x18x128xf32, #tpu.memory_space<vmem>>, vector<2x16x128xf32>
    %62 = vector.shape_cast %61 : vector<2x16x128xf32> to vector<32x128xf32>
    %63 = arith.truncf %62 : vector<32x128xf32> to vector<32x128xbf16>
    %c0_53 = arith.constant 0 : index
    %c1_54 = arith.constant 1 : index
    %c0_55 = arith.constant 0 : index
    %64 = vector.load %arg15[%c0_53, %c1_54, %c0_55] : memref<2x18x128xf32, #tpu.memory_space<vmem>>, vector<2x16x128xf32>
    %65 = vector.shape_cast %64 : vector<2x16x128xf32> to vector<32x128xf32>
    %66 = arith.truncf %65 : vector<32x128xf32> to vector<32x128xbf16>
    %c0_56 = arith.constant 0 : index
    %c2_57 = arith.constant 2 : index
    %c0_58 = arith.constant 0 : index
    %67 = vector.load %arg15[%c0_56, %c2_57, %c0_58] : memref<2x18x128xf32, #tpu.memory_space<vmem>>, vector<2x16x128xf32>
    %68 = vector.shape_cast %67 : vector<2x16x128xf32> to vector<32x128xf32>
    %69 = arith.truncf %68 : vector<32x128xf32> to vector<32x128xbf16>
    %cst_59 = arith.constant 0.000000e+00 : f32
    %70 = vector.broadcast %cst_59 : f32 to vector<32x128xf32>
    %c0_60 = arith.constant 0 : index
    %c0_61 = arith.constant 0 : index
    %c0_62 = arith.constant 0 : index
    %71 = vector.load %arg5[%c0_60, %c0_61, %c0_62] : memref<3x128x128xbf16, #tpu.memory_space<vmem>>, vector<1x128x128xbf16>
    %72 = vector.shape_cast %71 : vector<1x128x128xbf16> to vector<128x128xbf16>
    %cst_63 = arith.constant dense<0.000000e+00> : vector<32x128xf32>
    %73 = tpu.matmul %63, %72, %cst_63 {dimension_numbers = #tpu.dot_dimension_numbers<[1], [0], [0], [1], [0, 0, 1, 1], [], []>} : vector<32x128xbf16>, vector<128x128xbf16>, vector<32x128xf32> -> vector<32x128xf32>
    %74 = arith.addf %70, %73 : vector<32x128xf32>
    %c1_64 = arith.constant 1 : index
    %c0_65 = arith.constant 0 : index
    %c0_66 = arith.constant 0 : index
    %75 = vector.load %arg5[%c1_64, %c0_65, %c0_66] : memref<3x128x128xbf16, #tpu.memory_space<vmem>>, vector<1x128x128xbf16>
    %76 = vector.shape_cast %75 : vector<1x128x128xbf16> to vector<128x128xbf16>
    %cst_67 = arith.constant dense<0.000000e+00> : vector<32x128xf32>
    %77 = tpu.matmul %66, %76, %cst_67 {dimension_numbers = #tpu.dot_dimension_numbers<[1], [0], [0], [1], [0, 0, 1, 1], [], []>} : vector<32x128xbf16>, vector<128x128xbf16>, vector<32x128xf32> -> vector<32x128xf32>
    %78 = arith.addf %74, %77 : vector<32x128xf32>
    %c2_68 = arith.constant 2 : index
    %c0_69 = arith.constant 0 : index
    %c0_70 = arith.constant 0 : index
    %79 = vector.load %arg5[%c2_68, %c0_69, %c0_70] : memref<3x128x128xbf16, #tpu.memory_space<vmem>>, vector<1x128x128xbf16>
    %80 = vector.shape_cast %79 : vector<1x128x128xbf16> to vector<128x128xbf16>
    %cst_71 = arith.constant dense<0.000000e+00> : vector<32x128xf32>
    %81 = tpu.matmul %69, %80, %cst_71 {dimension_numbers = #tpu.dot_dimension_numbers<[1], [0], [0], [1], [0, 0, 1, 1], [], []>} : vector<32x128xbf16>, vector<128x128xbf16>, vector<32x128xf32> -> vector<32x128xf32>
    %82 = arith.addf %78, %81 : vector<32x128xf32>
    %c0_72 = arith.constant 0 : index
    %c0_73 = arith.constant 0 : index
    %83 = vector.load %arg6[%c0_72, %c0_73] : memref<1x128xf32, #tpu.memory_space<vmem>>, vector<1x128xf32>
    %84 = vector.broadcast %83 : vector<1x128xf32> to vector<32x128xf32>
    %85 = arith.addf %82, %84 : vector<32x128xf32>
    %cst_74 = arith.constant dense<0.000000e+00> : vector<128xf32>
    %86 = vector.multi_reduction <add>, %85, %cst_74 [0] : vector<32x128xf32> to vector<128xf32>
    %87 = vector.shape_cast %86 : vector<128xf32> to vector<1x128xf32>
    %88 = arith.mulf %85, %85 : vector<32x128xf32>
    %cst_75 = arith.constant dense<0.000000e+00> : vector<128xf32>
    %89 = vector.multi_reduction <add>, %88, %cst_75 [0] : vector<32x128xf32> to vector<128xf32>
    %90 = vector.shape_cast %89 : vector<128xf32> to vector<1x128xf32>
    %c0_76 = arith.constant 0 : index
    %c0_77 = arith.constant 0 : index
    %91 = vector.load %arg9[%c0_76, %c0_77] : memref<128x8xf32, #tpu.memory_space<vmem>>, vector<128x8xf32>
    %cst_78 = arith.constant dense<0.000000e+00> : vector<1x8xf32>
    %92 = tpu.matmul %87, %91, %cst_78 {dimension_numbers = #tpu.dot_dimension_numbers<[1], [0], [0], [1], [0, 0, 1, 1], [], []>} : vector<1x128xf32>, vector<128x8xf32>, vector<1x8xf32> -> vector<1x8xf32>
    %c0_79 = arith.constant 0 : index
    %c0_80 = arith.constant 0 : index
    %93 = vector.load %arg9[%c0_79, %c0_80] : memref<128x8xf32, #tpu.memory_space<vmem>>, vector<128x8xf32>
    %cst_81 = arith.constant dense<0.000000e+00> : vector<1x8xf32>
    %94 = tpu.matmul %90, %93, %cst_81 {dimension_numbers = #tpu.dot_dimension_numbers<[1], [0], [0], [1], [0, 0, 1, 1], [], []>} : vector<1x128xf32>, vector<128x8xf32>, vector<1x8xf32> -> vector<1x8xf32>
    %cst_82 = arith.constant 5.120000e+02 : f32
    %95 = vector.broadcast %cst_82 : f32 to vector<1x8xf32>
    %96 = arith.divf %92, %95 : vector<1x8xf32>
    %cst_83 = arith.constant 5.120000e+02 : f32
    %97 = vector.broadcast %cst_83 : f32 to vector<1x8xf32>
    %98 = arith.divf %94, %97 : vector<1x8xf32>
    %99 = arith.mulf %96, %96 : vector<1x8xf32>
    %100 = arith.subf %98, %99 : vector<1x8xf32>
    %cst_84 = arith.constant 0.000000e+00 : f32
    %101 = vector.broadcast %cst_84 : f32 to vector<1x8xf32>
    %102 = arith.maximumf %100, %101 : vector<1x8xf32>
    %c0_85 = arith.constant 0 : index
    %c0_86 = arith.constant 0 : index
    %103 = vector.load %arg7[%c0_85, %c0_86] : memref<1x8xf32, #tpu.memory_space<vmem>>, vector<1x8xf32>
    %cst_87 = arith.constant 9.99999974E-6 : f32
    %104 = vector.broadcast %cst_87 : f32 to vector<1x8xf32>
    %105 = arith.addf %102, %104 : vector<1x8xf32>
    %106 = math.rsqrt %105 : vector<1x8xf32>
    %107 = arith.mulf %103, %106 : vector<1x8xf32>
    %c0_88 = arith.constant 0 : index
    %c0_89 = arith.constant 0 : index
    %108 = vector.load %arg8[%c0_88, %c0_89] : memref<1x8xf32, #tpu.memory_space<vmem>>, vector<1x8xf32>
    %109 = arith.mulf %96, %107 : vector<1x8xf32>
    %110 = arith.subf %108, %109 : vector<1x8xf32>
    %c0_90 = arith.constant 0 : index
    %c0_91 = arith.constant 0 : index
    %111 = vector.load %arg10[%c0_90, %c0_91] : memref<8x128xf32, #tpu.memory_space<vmem>>, vector<8x128xf32>
    %cst_92 = arith.constant dense<0.000000e+00> : vector<1x128xf32>
    %112 = tpu.matmul %107, %111, %cst_92 {dimension_numbers = #tpu.dot_dimension_numbers<[1], [0], [0], [1], [0, 0, 1, 1], [], []>} : vector<1x8xf32>, vector<8x128xf32>, vector<1x128xf32> -> vector<1x128xf32>
    %c0_93 = arith.constant 0 : index
    %c0_94 = arith.constant 0 : index
    %113 = vector.load %arg10[%c0_93, %c0_94] : memref<8x128xf32, #tpu.memory_space<vmem>>, vector<8x128xf32>
    %cst_95 = arith.constant dense<0.000000e+00> : vector<1x128xf32>
    %114 = tpu.matmul %110, %113, %cst_95 {dimension_numbers = #tpu.dot_dimension_numbers<[1], [0], [0], [1], [0, 0, 1, 1], [], []>} : vector<1x8xf32>, vector<8x128xf32>, vector<1x128xf32> -> vector<1x128xf32>
    %115 = vector.broadcast %112 : vector<1x128xf32> to vector<32x128xf32>
    %116 = arith.mulf %85, %115 : vector<32x128xf32>
    %117 = vector.broadcast %114 : vector<1x128xf32> to vector<32x128xf32>
    %118 = arith.addf %116, %117 : vector<32x128xf32>
    %cst_96 = arith.constant 0.000000e+00 : f32
    %119 = vector.broadcast %cst_96 : f32 to vector<32x128xf32>
    %120 = arith.maximumf %118, %119 : vector<32x128xf32>
    %c0_97 = arith.constant 0 : index
    %c0_98 = arith.constant 0 : index
    %121 = vector.load %arg12[%c0_97, %c0_98] : memref<32x128xf32, #tpu.memory_space<vmem>>, vector<32x128xf32>
    tpu.vector_store %arg12[%c0_97, %c0_98], %120 {strides = array<i32>} : memref<32x128xf32, #tpu.memory_space<vmem>>, vector<32x128xf32>,
    %c0_99 = arith.constant 0 : index
    %c0_100 = arith.constant 0 : index
    %122 = vector.load %arg11[%c0_99, %c0_100] : memref<32x128xi32, #tpu.memory_space<vmem>>, vector<32x128xi32>
    %123 = vector.shape_cast %120 : vector<32x128xf32> to vector<16x2x128xf32>
    %124 = vector.shape_cast %122 : vector<32x128xi32> to vector<16x2x128xi32>
    %125 = vector.extract_strided_slice %123 {offsets = [0, 0, 0], sizes = [16, 1, 128], strides = [1, 1, 1]} : vector<16x2x128xf32> to vector<16x1x128xf32>
    %126 = vector.extract_strided_slice %123 {offsets = [0, 1, 0], sizes = [16, 1, 128], strides = [1, 1, 1]} : vector<16x2x128xf32> to vector<16x1x128xf32>
    %127 = vector.extract_strided_slice %124 {offsets = [0, 0, 0], sizes = [16, 1, 128], strides = [1, 1, 1]} : vector<16x2x128xi32> to vector<16x1x128xi32>
    %128 = vector.extract_strided_slice %124 {offsets = [0, 1, 0], sizes = [16, 1, 128], strides = [1, 1, 1]} : vector<16x2x128xi32> to vector<16x1x128xi32>
    %129 = arith.cmpf ogt, %126, %125 : vector<16x1x128xf32>
    %130 = arith.select %129, %126, %125 : vector<16x1x128xi1>, vector<16x1x128xf32>
    %c0_101 = arith.constant 0 : index
    %c0_102 = arith.constant 0 : index
    %c0_103 = arith.constant 0 : index
    %131 = vector.load %arg13[%c0_101, %c0_102, %c0_103] : memref<16x1x128xf32, #tpu.memory_space<vmem>>, vector<16x1x128xf32>
    tpu.vector_store %arg13[%c0_101, %c0_102, %c0_103], %130 {strides = array<i32>} : memref<16x1x128xf32, #tpu.memory_space<vmem>>, vector<16x1x128xf32>,
    %132 = arith.select %129, %128, %127 : vector<16x1x128xi1>, vector<16x1x128xi32>
    %c0_104 = arith.constant 0 : index
    %c0_105 = arith.constant 0 : index
    %c0_106 = arith.constant 0 : index
    %133 = vector.load %arg14[%c0_104, %c0_105, %c0_106] : memref<16x1x128xi32, #tpu.memory_space<vmem>>, vector<16x1x128xi32>
    tpu.vector_store %arg14[%c0_104, %c0_105, %c0_106], %132 {strides = array<i32>} : memref<16x1x128xi32, #tpu.memory_space<vmem>>, vector<16x1x128xi32>,
    return
  }
}

</mosaic_0001>

<llo_original>
// kernel: tile.17
$region0: #{tile.17}
  %s0 = inlined_call_operand.vmem [shape: f32[16,8,8], index: 0, kind: input, shape index: {}]
  %s1 = inlined_call_operand.vmem [shape: f32[128,8], index: 1, kind: output, shape index: {}]
  %s2 = smov 3
  %v3 = vld [vmem:[%s0] ss:$16 sm:%s2]
  %s4 = smov 12
  %v5 = vld [vmem:[%s0] ss:$16 sm:%s4]
  %vm6 = vcmask 1043458
  %v7 = vsel %vm6, %v5, %v3
  %s8 = smov 48
  %v9 = vld [vmem:[%s0] ss:$16 sm:%s8]
  %vm10 = vcmask 1045508
  %v11 = vsel %vm10, %v9, %v7
  %s12 = smov 192
  %v13 = vld [vmem:[%s0] ss:$16 sm:%s12]
  %vm14 = vcmask 1047558
  %v15 = vsel %vm14, %v13, %v11
  %vm16 = vcmask 64512
  %17 = vst.msk [vmem:[%s1] sm:$0xff] %vm16, %v15
  %s18 = scalar_lea.vmem %s0, 15
  %s19 = smov 3
  %v20 = vld [vmem:[%s18] ss:$16 sm:%s19]
  %s21 = scalar_lea.vmem %s0, 15
  %s22 = smov 12
  %v23 = vld [vmem:[%s21] ss:$16 sm:%s22]
  %vm24 = vcmask 1043458
  %v25 = vsel %vm24, %v23, %v20
  %s26 = scalar_lea.vmem %s0, 15
  %s27 = smov 48
  %v28 = vld [vmem:[%s26] ss:$16 sm:%s27]
  %vm29 = vcmask 1045508
  %v30 = vsel %vm29, %v28, %v25
  %s31 = scalar_lea.vmem %s0, 15
  %s32 = smov 192
  %v33 = vld [vmem:[%s31] ss:$16 sm:%s32]
  %vm34 = vcmask 1047558
  %v35 = vsel %vm34, %v33, %v30
  %36 = vrot.lane.b32.xlu0 %v35, 120
  %v37 = vpop.permute.xlu0 %36
  %vm38 = vcmask 1048512
  %39 = vst.msk [vmem:[%s1] sm:$0xff] %vm38, %v37
  %s40 = scalar_lea.vmem %s0, 14
  %s41 = smov 3
  %v42 = vld [vmem:[%s40] ss:$16 sm:%s41]
  %s43 = scalar_lea.vmem %s0, 14
  %s44 = smov 12
  %v45 = vld [vmem:[%s43] ss:$16 sm:%s44]
  %vm46 = vcmask 1043458
  %v47 = vsel %vm46, %v45, %v42
  %s48 = scalar_lea.vmem %s0, 14
  %s49 = smov 48
  %v50 = vld [vmem:[%s48] ss:$16 sm:%s49]
  %vm51 = vcmask 1045508
  %v52 = vsel %vm51, %v50, %v47
  %s53 = scalar_lea.vmem %s0, 14
  %s54 = smov 192
  %v55 = vld [vmem:[%s53] ss:$16 sm:%s54]
  %vm56 = vcmask 1047558
  %v57 = vsel %vm56, %v55, %v52
  %58 = vrot.lane.b32.xlu0 %v57, 112
  %v59 = vpop.permute.xlu0 %58
  %vm60 = vcmask 982912
  %61 = vst.msk [vmem:[%s1] sm:$0xff] %vm60, %v59
  %s62 = scalar_lea.vmem %s0, 13
  %s63 = smov 3
  %v64 = vld [vmem:[%s62] ss:$16 sm:%s63]
  %s65 = scalar_lea.vmem %s0, 13
  %s66 = smov 12
  %v67 = vld [vmem:[%s65] ss:$16 sm:%s66]
  %vm68 = vcmask 1043458
  %v69 = vsel %vm68, %v67, %v64
  %s70 = scalar_lea.vmem %s0, 13
  %s71 = smov 48
  %v72 = vld [vmem:[%s70] ss:$16 sm:%s71]
  %vm73 = vcmask 1045508
  %v74 = vsel %vm73, %v72, %v69
  %s75 = scalar_lea.vmem %s0, 13
  %s76 = smov 192
  %v77 = vld [vmem:[%s75] ss:$16 sm:%s76]
  %vm78 = vcmask 1047558
  %v79 = vsel %vm78, %v77, %v74
  %80 = vrot.lane.b32.xlu0 %v79, 104
  %v81 = vpop.permute.xlu0 %80
  %vm82 = vcmask 917312
  %83 = vst.msk [vmem:[%s1] sm:$0xff] %vm82, %v81
  %s84 = scalar_lea.vmem %s0, 12
  %s85 = smov 3
  %v86 = vld [vmem:[%s84] ss:$16 sm:%s85]
  %s87 = scalar_lea.vmem %s0, 12
  %s88 = smov 12
  %v89 = vld [vmem:[%s87] ss:$16 sm:%s88]
  %vm90 = vcmask 1043458
  %v91 = vsel %vm90, %v89, %v86
  %s92 = scalar_lea.vmem %s0, 12
  %s93 = smov 48
  %v94 = vld [vmem:[%s92] ss:$16 sm:%s93]
  %vm95 = vcmask 1045508
  %v96 = vsel %vm95, %v94, %v91
  %s97 = scalar_lea.vmem %s0, 12
  %s98 = smov 192
  %v99 = vld [vmem:[%s97] ss:$16 sm:%s98]
  %vm100 = vcmask 1047558
  %v101 = vsel %vm100, %v99, %v96
  %102 = vrot.lane.b32.xlu0 %v101, 96
  %v103 = vpop.permute.xlu0 %102
  %vm104 = vcmask 851712
  %105 = vst.msk [vmem:[%s1] sm:$0xff] %vm104, %v103
  %s106 = scalar_lea.vmem %s0, 11
  %s107 = smov 3
  %v108 = vld [vmem:[%s106] ss:$16 sm:%s107]
  %s109 = scalar_lea.vmem %s0, 11
  %s110 = smov 12
  %v111 = vld [vmem:[%s109] ss:$16 sm:%s110]
  %vm112 = vcmask 1043458
  %v113 = vsel %vm112, %v111, %v108
  %s114 = scalar_lea.vmem %s0, 11
  %s115 = smov 48
  %v116 = vld [vmem:[%s114] ss:$16 sm:%s115]
  %vm117 = vcmask 1045508
  %v118 = vsel %vm117, %v116, %v113
  %s119 = scalar_lea.vmem %s0, 11
  %s120 = smov 192
  %v121 = vld [vmem:[%s119] ss:$16 sm:%s120]
  %vm122 = vcmask 1047558
  %v123 = vsel %vm122, %v121, %v118
  %124 = vrot.lane.b32.xlu0 %v123, 88
  %v125 = vpop.permute.xlu0 %124
  %vm126 = vcmask 786112
  %127 = vst.msk [vmem:[%s1] sm:$0xff] %vm126, %v125
  %s128 = scalar_lea.vmem %s0, 10
  %s129 = smov 3
  %v130 = vld [vmem:[%s128] ss:$16 sm:%s129]
  %s131 = scalar_lea.vmem %s0, 10
  %s132 = smov 12
  %v133 = vld [vmem:[%s131] ss:$16 sm:%s132]
  %vm134 = vcmask 1043458
  %v135 = vsel %vm134, %v133, %v130
  %s136 = scalar_lea.vmem %s0, 10
  %s137 = smov 48
  %v138 = vld [vmem:[%s136] ss:$16 sm:%s137]
  %vm139 = vcmask 1045508
  %v140 = vsel %vm139, %v138, %v135
  %s141 = scalar_lea.vmem %s0, 10
  %s142 = smov 192
  %v143 = vld [vmem:[%s141] ss:$16 sm:%s142]
  %vm144 = vcmask 1047558
  %v145 = vsel %vm144, %v143, %v140
  %146 = vrot.lane.b32.xlu0 %v145, 80
  %v147 = vpop.permute.xlu0 %146
  %vm148 = vcmask 720512
  %149 = vst.msk [vmem:[%s1] sm:$0xff] %vm148, %v147
  %s150 = scalar_lea.vmem %s0, 9
  %s151 = smov 3
  %v152 = vld [vmem:[%s150] ss:$16 sm:%s151]
  %s153 = scalar_lea.vmem %s0, 9
  %s154 = smov 12
  %v155 = vld [vmem:[%s153] ss:$16 sm:%s154]
  %vm156 = vcmask 1043458
  %v157 = vsel %vm156, %v155, %v152
  %s158 = scalar_lea.vmem %s0, 9
  %s159 = smov 48
  %v160 = vld [vmem:[%s158] ss:$16 sm:%s159]
  %vm161 = vcmask 1045508
  %v162 = vsel %vm161, %v160, %v157
  %s163 = scalar_lea.vmem %s0, 9
  %s164 = smov 192
  %v165 = vld [vmem:[%s163] ss:$16 sm:%s164]
  %vm166 = vcmask 1047558
  %v167 = vsel %vm166, %v165, %v162
  %168 = vrot.lane.b32.xlu0 %v167, 72
  %v169 = vpop.permute.xlu0 %168
  %vm170 = vcmask 654912
  %171 = vst.msk [vmem:[%s1] sm:$0xff] %vm170, %v169
  %s172 = scalar_lea.vmem %s0, 8
  %s173 = smov 3
  %v174 = vld [vmem:[%s172] ss:$16 sm:%s173]
  %s175 = scalar_lea.vmem %s0, 8
  %s176 = smov 12
  %v177 = vld [vmem:[%s175] ss:$16 sm:%s176]
  %vm178 = vcmask 1043458
  %v179 = vsel %vm178, %v177, %v174
  %s180 = scalar_lea.vmem %s0, 8
  %s181 = smov 48
  %v182 = vld [vmem:[%s180] ss:$16 sm:%s181]
  %vm183 = vcmask 1045508
  %v184 = vsel %vm183, %v182, %v179
  %s185 = scalar_lea.vmem %s0, 8
  %s186 = smov 192
  %v187 = vld [vmem:[%s185] ss:$16 sm:%s186]
  %vm188 = vcmask 1047558
  %v189 = vsel %vm188, %v187, %v184
  %190 = vrot.lane.b32.xlu0 %v189, 64
  %v191 = vpop.permute.xlu0 %190
  %vm192 = vcmask 589312
  %193 = vst.msk [vmem:[%s1] sm:$0xff] %vm192, %v191
  %s194 = scalar_lea.vmem %s0, 7
  %s195 = smov 3
  %v196 = vld [vmem:[%s194] ss:$16 sm:%s195]
  %s197 = scalar_lea.vmem %s0, 7
  %s198 = smov 12
  %v199 = vld [vmem:[%s197] ss:$16 sm:%s198]
  %vm200 = vcmask 1043458
  %v201 = vsel %vm200, %v199, %v196
  %s202 = scalar_lea.vmem %s0, 7
  %s203 = smov 48
  %v204 = vld [vmem:[%s202] ss:$16 sm:%s203]
  %vm205 = vcmask 1045508
  %v206 = vsel %vm205, %v204, %v201
  %s207 = scalar_lea.vmem %s0, 7
  %s208 = smov 192
  %v209 = vld [vmem:[%s207] ss:$16 sm:%s208]
  %vm210 = vcmask 1047558
  %v211 = vsel %vm210, %v209, %v206
  %212 = vrot.lane.b32.xlu0 %v211, 56
  %v213 = vpop.permute.xlu0 %212
  %vm214 = vcmask 523712
  %215 = vst.msk [vmem:[%s1] sm:$0xff] %vm214, %v213
  %s216 = scalar_lea.vmem %s0, 6
  %s217 = smov 3
  %v218 = vld [vmem:[%s216] ss:$16 sm:%s217]
  %s219 = scalar_lea.vmem %s0, 6
  %s220 = smov 12
  %v221 = vld [vmem:[%s219] ss:$16 sm:%s220]
  %vm222 = vcmask 1043458
  %v223 = vsel %vm222, %v221, %v218
  %s224 = scalar_lea.vmem %s0, 6
  %s225 = smov 48
  %v226 = vld [vmem:[%s224] ss:$16 sm:%s225]
  %vm227 = vcmask 1045508
  %v228 = vsel %vm227, %v226, %v223
  %s229 = scalar_lea.vmem %s0, 6
  %s230 = smov 192
  %v231 = vld [vmem:[%s229] ss:$16 sm:%s230]
  %vm232 = vcmask 1047558
  %v233 = vsel %vm232, %v231, %v228
  %234 = vrot.lane.b32.xlu0 %v233, 48
  %v235 = vpop.permute.xlu0 %234
  %vm236 = vcmask 458112
  %237 = vst.msk [vmem:[%s1] sm:$0xff] %vm236, %v235
  %s238 = scalar_lea.vmem %s0, 5
  %s239 = smov 3
  %v240 = vld [vmem:[%s238] ss:$16 sm:%s239]
  %s241 = scalar_lea.vmem %s0, 5
  %s242 = smov 12
  %v243 = vld [vmem:[%s241] ss:$16 sm:%s242]
  %vm244 = vcmask 1043458
  %v245 = vsel %vm244, %v243, %v240
  %s246 = scalar_lea.vmem %s0, 5
  %s247 = smov 48
  %v248 = vld [vmem:[%s246] ss:$16 sm:%s247]
  %vm249 = vcmask 1045508
  %v250 = vsel %vm249, %v248, %v245
  %s251 = scalar_lea.vmem %s0, 5
  %s252 = smov 192
  %v253 = vld [vmem:[%s251] ss:$16 sm:%s252]
  %vm254 = vcmask 1047558
  %v255 = vsel %vm254, %v253, %v250
  %256 = vrot.lane.b32.xlu0 %v255, 40
  %v257 = vpop.permute.xlu0 %256
  %vm258 = vcmask 392512
  %259 = vst.msk [vmem:[%s1] sm:$0xff] %vm258, %v257
  %s260 = scalar_lea.vmem %s0, 4
  %s261 = smov 3
  %v262 = vld [vmem:[%s260] ss:$16 sm:%s261]
  %s263 = scalar_lea.vmem %s0, 4
  %s264 = smov 12
  %v265 = vld [vmem:[%s263] ss:$16 sm:%s264]
  %vm266 = vcmask 1043458
  %v267 = vsel %vm266, %v265, %v262
  %s268 = scalar_lea.vmem %s0, 4
  %s269 = smov 48
  %v270 = vld [vmem:[%s268] ss:$16 sm:%s269]
  %vm271 = vcmask 1045508
  %v272 = vsel %vm271, %v270, %v267
  %s273 = scalar_lea.vmem %s0, 4
  %s274 = smov 192
  %v275 = vld [vmem:[%s273] ss:$16 sm:%s274]
  %vm276 = vcmask 1047558
  %v277 = vsel %vm276, %v275, %v272
  %278 = vrot.lane.b32.xlu0 %v277, 32
  %v279 = vpop.permute.xlu0 %278
  %vm280 = vcmask 326912
  %281 = vst.msk [vmem:[%s1] sm:$0xff] %vm280, %v279
  %s282 = scalar_lea.vmem %s0, 3
  %s283 = smov 3
  %v284 = vld [vmem:[%s282] ss:$16 sm:%s283]
  %s285 = scalar_lea.vmem %s0, 3
  %s286 = smov 12
  %v287 = vld [vmem:[%s285] ss:$16 sm:%s286]
  %vm288 = vcmask 1043458
  %v289 = vsel %vm288, %v287, %v284
  %s290 = scalar_lea.vmem %s0, 3
  %s291 = smov 48
  %v292 = vld [vmem:[%s290] ss:$16 sm:%s291]
  %vm293 = vcmask 1045508
  %v294 = vsel %vm293, %v292, %v289
  %s295 = scalar_lea.vmem %s0, 3
  %s296 = smov 192
  %v297 = vld [vmem:[%s295] ss:$16 sm:%s296]
  %vm298 = vcmask 1047558
  %v299 = vsel %vm298, %v297, %v294
  %300 = vrot.lane.b32.xlu0 %v299, 24
  %v301 = vpop.permute.xlu0 %300
  %vm302 = vcmask 261312
  %303 = vst.msk [vmem:[%s1] sm:$0xff] %vm302, %v301
  %s304 = scalar_lea.vmem %s0, 2
  %s305 = smov 3
  %v306 = vld [vmem:[%s304] ss:$16 sm:%s305]
  %s307 = scalar_lea.vmem %s0, 2
  %s308 = smov 12
  %v309 = vld [vmem:[%s307] ss:$16 sm:%s308]
  %vm310 = vcmask 1043458
  %v311 = vsel %vm310, %v309, %v306
  %s312 = scalar_lea.vmem %s0, 2
  %s313 = smov 48
  %v314 = vld [vmem:[%s312] ss:$16 sm:%s313]
  %vm315 = vcmask 1045508
  %v316 = vsel %vm315, %v314, %v311
  %s317 = scalar_lea.vmem %s0, 2
  %s318 = smov 192
  %v319 = vld [vmem:[%s317] ss:$16 sm:%s318]
  %vm320 = vcmask 1047558
  %v321 = vsel %vm320, %v319, %v316
  %322 = vrot.lane.b32.xlu0 %v321, 16
  %v323 = vpop.permute.xlu0 %322
  %vm324 = vcmask 195712
  %325 = vst.msk [vmem:[%s1] sm:$0xff] %vm324, %v323
  %s326 = scalar_lea.vmem %s0, 1
  %s327 = smov 3
  %v328 = vld [vmem:[%s326] ss:$16 sm:%s327]
  %s329 = scalar_lea.vmem %s0, 1
  %s330 = smov 12
  %v331 = vld [vmem:[%s329] ss:$16 sm:%s330]
  %vm332 = vcmask 1043458
  %v333 = vsel %vm332, %v331, %v328
  %s334 = scalar_lea.vmem %s0, 1
  %s335 = smov 48
  %v336 = vld [vmem:[%s334] ss:$16 sm:%s335]
  %vm337 = vcmask 1045508
  %v338 = vsel %vm337, %v336, %v333
  %s339 = scalar_lea.vmem %s0, 1
  %s340 = smov 192
  %v341 = vld [vmem:[%s339] ss:$16 sm:%s340]
  %vm342 = vcmask 1047558
  %v343 = vsel %vm342, %v341, %v338
  %344 = vrot.lane.b32.xlu0 %v343, 8
  %v345 = vpop.permute.xlu0 %344
  %vm346 = vcmask 130112
  %347 = vst.msk [vmem:[%s1] sm:$0xff] %vm346, %v345

// kernel: encoder_block_forward.1
$region0: #{encoder_block_forward.1}
  #allocation0 [shape = 'u32[]', space=smem, size = 0x4, offset = 0x4, fixed_abs, tag = 'smem constant byte address 0x4 - core index']
  #allocation1 [shape = 'u32[72,128]{1,0:T(1,128)}', space=vmem, size = 0x9000, scoped, tag = 'internal scratch']
  #allocation2 [shape = 'f32[2,18,128]{2,1,0:T(8,128)}', space=vmem, size = 0x6000, scoped, tag = 'scratch operand']
  %s0 = inlined_call_operand.vmem [shape: bf16[2,18,64], index: 0, kind: input, shape index: {}]
  %s1 = inlined_call_operand.vmem [shape: bf16[3,64,128], index: 1, kind: input, shape index: {}]
  %s2 = inlined_call_operand.vmem [shape: f32[1,128], index: 2, kind: input, shape index: {}]
  %s3 = inlined_call_operand.vmem [shape: f32[1,8], index: 3, kind: input, shape index: {}]
  %s4 = inlined_call_operand.vmem [shape: f32[1,8], index: 4, kind: input, shape index: {}]
  %s5 = inlined_call_operand.vmem [shape: bf16[3,128,128], index: 5, kind: input, shape index: {}]
  %s6 = inlined_call_operand.vmem [shape: f32[1,128], index: 6, kind: input, shape index: {}]
  %s7 = inlined_call_operand.vmem [shape: f32[1,8], index: 7, kind: input, shape index: {}]
  %s8 = inlined_call_operand.vmem [shape: f32[1,8], index: 8, kind: input, shape index: {}]
  %s9 = inlined_call_operand.vmem [shape: f32[128,8], index: 9, kind: input, shape index: {}]
  %s10 = inlined_call_operand.vmem [shape: f32[8,128], index: 10, kind: input, shape index: {}]
  %s11 = inlined_call_operand.vmem [shape: s32[32,128], index: 11, kind: input, shape index: {}]
  %s12 = inlined_call_operand.vmem [shape: f32[32,128], index: 12, kind: output, shape index: {0}]
  %s13 = inlined_call_operand.vmem [shape: f32[16,1,128], index: 13, kind: output, shape index: {1}]
  %s14 = inlined_call_operand.vmem [shape: s32[16,1,128], index: 14, kind: output, shape index: {2}]
  %15 = xla_tuple %s12, %s13, %s14
  %s16 = sld [smem:[#allocation0]]
  $region74: #{encoder_block_forward.1} parent=0
    _
  %s18 = ssub.s32 1, %s16
  %s19 = scalar_select 0, %s18, %s16
  // Predicated region
  $region2: #{encoder_block_forward.1} parent=0 // pred_check
    _
  $region3: #{encoder_block_forward.1} parent=0 // pred_check_branch
    %21 = sbr.rel (0) target = $region5
  $region4: #{encoder_block_forward.1} parent=0 // pred_region
    _
  $region5: #{encoder_block_forward.1} parent=0 // pred_fallthru
    _
  // Predicated region
  $region6: #{encoder_block_forward.1} parent=0 // pred_check
    _
  $region7: #{encoder_block_forward.1} parent=0 // pred_check_branch
    %23 = sbr.rel (0) target = $region9
  $region8: #{encoder_block_forward.1} parent=0 // pred_region
    _
  $region9: #{encoder_block_forward.1} parent=0 // pred_fallthru
    _
  // Predicated region
  $region10: #{encoder_block_forward.1} parent=0 // pred_check
    _
  $region11: #{encoder_block_forward.1} parent=0 // pred_check_branch
    %25 = sbr.rel (0) target = $region13
  $region12: #{encoder_block_forward.1} parent=0 // pred_region
    _
  $region13: #{encoder_block_forward.1} parent=0 // pred_fallthru
    _
  // Predicated region
  $region14: #{encoder_block_forward.1} parent=0 // pred_check
    _
  $region15: #{encoder_block_forward.1} parent=0 // pred_check_branch
    %27 = sbr.rel (0) target = $region17
  $region16: #{encoder_block_forward.1} parent=0 // pred_region
    _
  $region17: #{encoder_block_forward.1} parent=0 // pred_fallthru
    _
  // Predicated region
  $region18: #{encoder_block_forward.1} parent=0 // pred_check
    _
  $region19: #{encoder_block_forward.1} parent=0 // pred_check_branch
    %29 = sbr.rel (0) target = $region21
  $region20: #{encoder_block_forward.1} parent=0 // pred_region
    _
  $region21: #{encoder_block_forward.1} parent=0 // pred_fallthru
    _
  // Predicated region
  $region22: #{encoder_block_forward.1} parent=0 // pred_check
    _
  $region23: #{encoder_block_forward.1} parent=0 // pred_check_branch
    %31 = sbr.rel (0) target = $region25
  $region24: #{encoder_block_forward.1} parent=0 // pred_region
    _
  $region25: #{encoder_block_forward.1} parent=0 // pred_fallthru
    _
  // Predicated region
  $region26: #{encoder_block_forward.1} parent=0 // pred_check
    _
  $region27: #{encoder_block_forward.1} parent=0 // pred_check_branch
    %33 = sbr.rel (0) target = $region29
  $region28: #{encoder_block_forward.1} parent=0 // pred_region
    _
  $region29: #{encoder_block_forward.1} parent=0 // pred_fallthru
    _
  // Predicated region
  $region30: #{encoder_block_forward.1} parent=0 // pred_check
    _
  $region31: #{encoder_block_forward.1} parent=0 // pred_check_branch
    %35 = sbr.rel (0) target = $region33
  $region32: #{encoder_block_forward.1} parent=0 // pred_region
    _
  $region33: #{encoder_block_forward.1} parent=0 // pred_fallthru
    _
  // Predicated region
  $region34: #{encoder_block_forward.1} parent=0 // pred_check
    _
  $region35: #{encoder_block_forward.1} parent=0 // pred_check_branch
    %37 = sbr.rel (0) target = $region37
  $region36: #{encoder_block_forward.1} parent=0 // pred_region
    _
  $region37: #{encoder_block_forward.1} parent=0 // pred_fallthru
    _
  // Predicated region
  $region38: #{encoder_block_forward.1} parent=0 // pred_check
    _
  $region39: #{encoder_block_forward.1} parent=0 // pred_check_branch
    %39 = sbr.rel (0) target = $region41
  $region40: #{encoder_block_forward.1} parent=0 // pred_region
    _
  $region41: #{encoder_block_forward.1} parent=0 // pred_fallthru
    _
  // Predicated region
  $region42: #{encoder_block_forward.1} parent=0 // pred_check
    _
  $region43: #{encoder_block_forward.1} parent=0 // pred_check_branch
    %41 = sbr.rel (0) target = $region45
  $region44: #{encoder_block_forward.1} parent=0 // pred_region
    _
  $region45: #{encoder_block_forward.1} parent=0 // pred_fallthru
    _
  // Predicated region
  $region46: #{encoder_block_forward.1} parent=0 // pred_check
    _
  $region47: #{encoder_block_forward.1} parent=0 // pred_check_branch
    %43 = sbr.rel (0) target = $region49
  $region48: #{encoder_block_forward.1} parent=0 // pred_region
    _
  $region49: #{encoder_block_forward.1} parent=0 // pred_fallthru
    _
  %v45 = vld [vmem:[%s0] sm:$0xf]
  %v46 = vld [vmem:[%s0 + $0x4] sm:$0xf]
  %v47 = vld [vmem:[%s0 + $0xc] sm:$0xf]
  %v48 = vld [vmem:[%s0 + $0x10] sm:$0xf]
  %v49 = vld [vmem:[%s0 + $0x8] sm:$0x1]
  %v50 = vld [vmem:[%s0 + $0x14] sm:$0x1]
  %vm51 = vsmask.f32 3328
  %vm52 = vsmask.f32 7440
  %vm53 = vmor %vm51, %vm52
  %v55 = vshrl.u32 %v45, 16
  %v57 = vrot.slane %v55, 4
  %v58 = vshll.u32 %v45, 16
  %v60 = vrot.slane %v58, 5
  %v61 = vor.u32 %v57, %v60
  %v62 = vrot.slane %v61, 4
  %v64 = vshll.u32 %v46, 16
  %v66 = vrot.slane %v64, 5
  %v67 = vsel %vm53, %v62, %v66
  %v68 = vshrl.u32 %v46, 16
  %v70 = vrot.slane %v68, 4
  %v71 = vor.u32 %v70, %v66
  %v72 = vrot.slane %v71, 4
  %v74 = vshll.u32 %v49, 16
  %v76 = vrot.slane %v74, 5
  %v77 = vsel %vm53, %v72, %v76
  %v79 = vshrl.u32 %v47, 16
  %v81 = vrot.slane %v79, 4
  %v82 = vshll.u32 %v47, 16
  %v84 = vrot.slane %v82, 5
  %v85 = vor.u32 %v81, %v84
  %v86 = vrot.slane %v85, 4
  %v88 = vshll.u32 %v48, 16
  %v90 = vrot.slane %v88, 5
  %v91 = vsel %vm53, %v86, %v90
  %v92 = vshrl.u32 %v48, 16
  %v94 = vrot.slane %v92, 4
  %v95 = vor.u32 %v94, %v90
  %v96 = vrot.slane %v95, 4
  %v98 = vshll.u32 %v50, 16
  %v100 = vrot.slane %v98, 5
  %v101 = vsel %vm53, %v96, %v100
  %v102 = vld [vmem:[%s0] sm:$0xe]
  %v103 = vld [vmem:[%s0 + $0xc] sm:$0xe]
  %vm110 = vcmask 1042432
  %vm111 = vcmask 1046532
  %vm112 = vmor %vm110, %vm111
  %v113 = vrot.slane %v102, 5
  %v114 = vrot.slane %v113, 4
  %v115 = vrot.slane %v46, 5
  %v116 = vsel %vm112, %v114, %v115
  %v117 = vrot.slane %v115, 4
  %v118 = vrot.slane %v49, 5
  %v119 = vsel %vm112, %v117, %v118
  %v120 = vrot.slane %v103, 5
  %v121 = vrot.slane %v120, 4
  %v122 = vrot.slane %v48, 5
  %v123 = vsel %vm112, %v121, %v122
  %v124 = vrot.slane %v122, 4
  %v125 = vrot.slane %v50, 5
  %v126 = vsel %vm112, %v124, %v125
  %v127 = vld [vmem:[%s1] sm:$0xf]
  %v128 = vld [vmem:[%s1 + $0x4] sm:$0xf]
  %v129 = vld [vmem:[%s1 + $0x8] sm:$0xf]
  %v130 = vld [vmem:[%s1 + $0xc] sm:$0xf]
  %v131 = vld [vmem:[%s1 + $0x10] sm:$0xf]
  %v132 = vld [vmem:[%s1 + $0x14] sm:$0xf]
  %v133 = vld [vmem:[%s1 + $0x18] sm:$0xf]
  %v134 = vld [vmem:[%s1 + $0x1c] sm:$0xf]
  %s135 = scalar_lea.vmem %s1, 32
  %v136 = vld [vmem:[%s135] sm:$0xf]
  %v137 = vld [vmem:[%s135 + $0x4] sm:$0xf]
  %v138 = vld [vmem:[%s135 + $0x8] sm:$0xf]
  %v139 = vld [vmem:[%s135 + $0xc] sm:$0xf]
  %v140 = vld [vmem:[%s135 + $0x10] sm:$0xf]
  %v141 = vld [vmem:[%s135 + $0x14] sm:$0xf]
  %v142 = vld [vmem:[%s135 + $0x18] sm:$0xf]
  %v143 = vld [vmem:[%s135 + $0x1c] sm:$0xf]
  %v144 = vunpack.c.l.b16 %v67
  %v145 = vunpack.c.l.b16 %v77
  %v146 = vunpack.c.l.b16 %v91
  %v147 = vunpack.c.l.b16 %v101
  %v148 = vpack.c.b16 %v145, %v144
  %v149 = vpack.c.b16 %v147, %v146
  %v158 = vunpack.c.l.b16 %v136
  %v159 = vunpack.c.l.b16 %v137
  %v160 = vunpack.c.l.b16 %v138
  %v161 = vunpack.c.l.b16 %v139
  %v162 = vunpack.c.l.b16 %v140
  %v163 = vunpack.c.l.b16 %v141
  %v164 = vunpack.c.l.b16 %v142
  %v165 = vunpack.c.l.b16 %v143
  %v166 = vpack.c.b16 %v159, %v158
  %v167 = vpack.c.b16 %v161, %v160
  %v168 = vpack.c.b16 %v163, %v162
  %v169 = vpack.c.b16 %v165, %v164
  %vm174 = vcmask 523264
  %v176 = vsel %vm174, %v148, 0
  %v179 = vsel %vm174, %v149, 0
  %181 = vmatpush.bf16.msra.mxu0 0
  %182 = vmatpush.bf16.msra.mxu0 0
  %183 = vmatpush.bf16.msra.mxu0 0
  %184 = vmatpush.bf16.msra.mxu0 0
  %185 = vmatpush.bf16.msra.mxu0 %v169
  %186 = vmatpush.bf16.msra.mxu0 %v168
  %187 = vmatpush.bf16.msra.mxu0 %v167
  %188 = vmatpush.bf16.msra.mxu0 %v166
  %189 = vmatmul.bf16.gmra.mxu0 %v176
  %v190 = vpop.f32.mrf.mxu0
  %v191 = vadd.f32 0.0, %v190
  %v192 = vpop.f32.mrf.mxu0
  %v193 = vadd.f32 0.0, %v192
  %194 = vmatmul.bf16.gmra.mxu0 %v179
  %v195 = vpop.f32.mrf.mxu0
  %v196 = vadd.f32 0.0, %v195
  %v197 = vpop.f32.mrf.mxu0
  %v198 = vadd.f32 0.0, %v197
  %199 = vdwg.mxu0
  %v202 = vunpack.c.l.b16 %v45
  %v203 = vunpack.c.l.b16 %v46
  %v204 = vunpack.c.l.b16 %v47
  %v205 = vunpack.c.l.b16 %v48
  %v206 = vpack.c.b16 %v203, %v202
  %v207 = vpack.c.b16 %v205, %v204
  %v216 = vunpack.c.l.b16 %v127
  %v217 = vunpack.c.l.b16 %v128
  %v218 = vunpack.c.l.b16 %v129
  %v219 = vunpack.c.l.b16 %v130
  %v220 = vunpack.c.l.b16 %v131
  %v221 = vunpack.c.l.b16 %v132
  %v222 = vunpack.c.l.b16 %v133
  %v223 = vunpack.c.l.b16 %v134
  %v224 = vpack.c.b16 %v217, %v216
  %v225 = vpack.c.b16 %v219, %v218
  %v226 = vpack.c.b16 %v221, %v220
  %v227 = vpack.c.b16 %v223, %v222
  %v233 = vsel %vm174, %v206, 0
  %v236 = vsel %vm174, %v207, 0
  %238 = vmatpush.bf16.msra.mxu0 0
  %239 = vmatpush.bf16.msra.mxu0 0
  %240 = vmatpush.bf16.msra.mxu0 0
  %241 = vmatpush.bf16.msra.mxu0 0
  %242 = vmatpush.bf16.msra.mxu0 %v227
  %243 = vmatpush.bf16.msra.mxu0 %v226
  %244 = vmatpush.bf16.msra.mxu0 %v225
  %245 = vmatpush.bf16.msra.mxu0 %v224
  %246 = vmatmul.bf16.gmra.mxu0 %v233
  %v247 = vpop.f32.mrf.mxu0
  %v248 = vadd.f32 %v191, %v247
  %v249 = vpop.f32.mrf.mxu0
  %v250 = vadd.f32 %v193, %v249
  %251 = vmatmul.bf16.gmra.mxu0 %v236
  %v252 = vpop.f32.mrf.mxu0
  %v253 = vadd.f32 %v196, %v252
  %v254 = vpop.f32.mrf.mxu0
  %v255 = vadd.f32 %v198, %v254
  %256 = vdwg.mxu0
  %s257 = scalar_lea.vmem %s1, 64
  %v258 = vld [vmem:[%s257] sm:$0xf]
  %v259 = vld [vmem:[%s257 + $0x4] sm:$0xf]
  %v260 = vld [vmem:[%s257 + $0x8] sm:$0xf]
  %v261 = vld [vmem:[%s257 + $0xc] sm:$0xf]
  %v262 = vld [vmem:[%s257 + $0x10] sm:$0xf]
  %v263 = vld [vmem:[%s257 + $0x14] sm:$0xf]
  %v264 = vld [vmem:[%s257 + $0x18] sm:$0xf]
  %v265 = vld [vmem:[%s257 + $0x1c] sm:$0xf]
  %v266 = vunpack.c.l.b16 %v116
  %v267 = vunpack.c.l.b16 %v119
  %v268 = vunpack.c.l.b16 %v123
  %v269 = vunpack.c.l.b16 %v126
  %v270 = vpack.c.b16 %v267, %v266
  %v271 = vpack.c.b16 %v269, %v268
  %v280 = vunpack.c.l.b16 %v258
  %v281 = vunpack.c.l.b16 %v259
  %v282 = vunpack.c.l.b16 %v260
  %v283 = vunpack.c.l.b16 %v261
  %v284 = vunpack.c.l.b16 %v262
  %v285 = vunpack.c.l.b16 %v263
  %v286 = vunpack.c.l.b16 %v264
  %v287 = vunpack.c.l.b16 %v265
  %v288 = vpack.c.b16 %v281, %v280
  %v289 = vpack.c.b16 %v283, %v282
  %v290 = vpack.c.b16 %v285, %v284
  %v291 = vpack.c.b16 %v287, %v286
  %v297 = vsel %vm174, %v270, 0
  %v300 = vsel %vm174, %v271, 0
  %302 = vmatpush.bf16.msra.mxu0 0
  %303 = vmatpush.bf16.msra.mxu0 0
  %304 = vmatpush.bf16.msra.mxu0 0
  %305 = vmatpush.bf16.msra.mxu0 0
  %306 = vmatpush.bf16.msra.mxu0 %v291
  %307 = vmatpush.bf16.msra.mxu0 %v290
  %308 = vmatpush.bf16.msra.mxu0 %v289
  %309 = vmatpush.bf16.msra.mxu0 %v288
  %310 = vmatmul.bf16.gmra.mxu0 %v297
  %v311 = vpop.f32.mrf.mxu0
  %v312 = vadd.f32 0.0, %v311
  %v313 = vpop.f32.mrf.mxu0
  %v314 = vadd.f32 0.0, %v313
  %315 = vmatmul.bf16.gmra.mxu0 %v300
  %v316 = vpop.f32.mrf.mxu0
  %v317 = vadd.f32 0.0, %v316
  %v318 = vpop.f32.mrf.mxu0
  %v319 = vadd.f32 0.0, %v318
  %320 = vdwg.mxu0
  %v321 = vadd.f32 %v248, %v312
  %v322 = vadd.f32 %v250, %v314
  %v323 = vadd.f32 %v253, %v317
  %v324 = vadd.f32 %v255, %v319
  %v325 = vld [vmem:[%s2] sm:$0x1]
  %v327 = vperm.slane %v325, 0
  %v329 = vadd.f32 %v321, %v327
  %v330 = vadd.f32 %v322, %v327
  %v331 = vadd.f32 %v323, %v327
  %v332 = vadd.f32 %v324, %v327
  %v333 = vadd.f32 %v329, %v330
  %v334 = vadd.f32 %v333, %v331
  %v335 = vadd.f32 %v334, %v332
  %v336 = vrot.slane %v335, 4
  %v337 = vadd.f32 %v335, %v336
  %v338 = vrot.slane %v337, 2
  %v339 = vadd.f32 %v337, %v338
  %v340 = vrot.slane %v339, 1
  %v341 = vadd.f32 %v339, %v340
  %v342 = vmul.f32 %v329, %v329
  %v343 = vmul.f32 %v330, %v330
  %v344 = vmul.f32 %v331, %v331
  %v345 = vmul.f32 %v332, %v332
  %v346 = vadd.f32 %v342, %v343
  %v347 = vadd.f32 %v346, %v344
  %v348 = vadd.f32 %v347, %v345
  %v349 = vrot.slane %v348, 4
  %v350 = vadd.f32 %v348, %v349
  %v351 = vrot.slane %v350, 2
  %v352 = vadd.f32 %v350, %v351
  %v353 = vrot.slane %v352, 1
  %v354 = vadd.f32 %v352, %v353
  %v355 = vld [vmem:[%s9] sm:$0xff]
  %v356 = vld [vmem:[%s9 + $0x8] sm:$0xff]
  %v357 = vld [vmem:[%s9 + $0x10] sm:$0xff]
  %v358 = vld [vmem:[%s9 + $0x18] sm:$0xff]
  %v359 = vld [vmem:[%s9 + $0x20] sm:$0xff]
  %v360 = vld [vmem:[%s9 + $0x28] sm:$0xff]
  %v361 = vld [vmem:[%s9 + $0x30] sm:$0xff]
  %v362 = vld [vmem:[%s9 + $0x38] sm:$0xff]
  %v363 = vld [vmem:[%s9 + $0x40] sm:$0xff]
  %v364 = vld [vmem:[%s9 + $0x48] sm:$0xff]
  %v365 = vld [vmem:[%s9 + $0x50] sm:$0xff]
  %v366 = vld [vmem:[%s9 + $0x58] sm:$0xff]
  %v367 = vld [vmem:[%s9 + $0x60] sm:$0xff]
  %v368 = vld [vmem:[%s9 + $0x68] sm:$0xff]
  %v369 = vld [vmem:[%s9 + $0x70] sm:$0xff]
  %v370 = vld [vmem:[%s9 + $0x78] sm:$0xff]
  %371 = vmatpush.msra.mxu0 %v370
  %372 = vmatpush.msra.mxu0 %v369
  %373 = vmatpush.msra.mxu0 %v368
  %374 = vmatpush.msra.mxu0 %v367
  %375 = vmatpush.msra.mxu0 %v366
  %376 = vmatpush.msra.mxu0 %v365
  %377 = vmatpush.msra.mxu0 %v364
  %378 = vmatpush.msra.mxu0 %v363
  %379 = vmatpush.msra.mxu0 %v362
  %380 = vmatpush.msra.mxu0 %v361
  %381 = vmatpush.msra.mxu0 %v360
  %382 = vmatpush.msra.mxu0 %v359
  %383 = vmatpush.msra.mxu0 %v358
  %384 = vmatpush.msra.mxu0 %v357
  %385 = vmatpush.msra.mxu0 %v356
  %386 = vmatpush.msra.mxu0 %v355
  %387 = vmatmul.f32.gmra.mxu0 %v341
  %v388 = vpop.f32.mrf.mxu0
  %v389 = vadd.f32 0.0, %v388
  %390 = vdwg.mxu0
  %391 = vmatpush.msra.mxu0 %v370
  %392 = vmatpush.msra.mxu0 %v369
  %393 = vmatpush.msra.mxu0 %v368
  %394 = vmatpush.msra.mxu0 %v367
  %395 = vmatpush.msra.mxu0 %v366
  %396 = vmatpush.msra.mxu0 %v365
  %397 = vmatpush.msra.mxu0 %v364
  %398 = vmatpush.msra.mxu0 %v363
  %399 = vmatpush.msra.mxu0 %v362
  %400 = vmatpush.msra.mxu0 %v361
  %401 = vmatpush.msra.mxu0 %v360
  %402 = vmatpush.msra.mxu0 %v359
  %403 = vmatpush.msra.mxu0 %v358
  %404 = vmatpush.msra.mxu0 %v357
  %405 = vmatpush.msra.mxu0 %v356
  %406 = vmatpush.msra.mxu0 %v355
  %407 = vmatmul.f32.gmra.mxu0 %v354
  %v408 = vpop.f32.mrf.mxu0
  %v409 = vadd.f32 0.0, %v408
  %410 = vdwg.mxu0
  %v411 = vrcp.pop 512.0
  %v412 = vmul.f32 512.0, %v411
  %v413 = vsub.f32 1.0, %v412
  %v414 = vmul.f32 %v411, %v413
  %v415 = vadd.f32 %v411, %v414
  %vm416 = vweird.f32 %v411
  %v417 = vsel %vm416, %v411, %v415
  %v418 = vmul.f32 %v389, %v417
  %v419 = vmul.f32 %v409, %v417
  %v420 = vmul.f32 %v418, %v418
  %v421 = vsub.f32 %v419, %v420
  %v422 = vmax.f32 %v421, 0.0
  %v423 = vld [vmem:[%s3] sm:$0x1]
  %v424 = vadd.f32 %v422, 1e-05
  %v425 = vrsqrt.pop %v424
  %v426 = vmul.f32 %v425, %v424
  %v427 = vmul.f32 %v426, %v425
  %v428 = vmul.f32 0.5, %v427
  %v429 = vsub.f32 1.5, %v428
  %v430 = vmul.f32 %v425, %v429
  %vm431 = vweird.f32 %v424
  %vm432 = vweird.f32 %v425
  %vm433 = vmor %vm431, %vm432
  %v434 = vsel %vm433, %v425, %v430
  %v435 = vmul.f32 %v423, %v434
  %v436 = vld [vmem:[%s4] sm:$0x1]
  %v437 = vmul.f32 %v418, %v435
  %v438 = vsub.f32 %v436, %v437
  %v439 = vld [vmem:[%s10] sm:$0xff]
  %vm440 = vcmask 64512
  %v442 = vsel %vm440, %v435, 0
  %444 = vmatpush.msra.mxu0 0.0
  %445 = vmatpush.msra.mxu0 0.0
  %446 = vmatpush.msra.mxu0 0.0
  %447 = vmatpush.msra.mxu0 0.0
  %448 = vmatpush.msra.mxu0 0.0
  %449 = vmatpush.msra.mxu0 0.0
  %450 = vmatpush.msra.mxu0 0.0
  %451 = vmatpush.msra.mxu0 0.0
  %452 = vmatpush.msra.mxu0 0.0
  %453 = vmatpush.msra.mxu0 0.0
  %454 = vmatpush.msra.mxu0 0.0
  %455 = vmatpush.msra.mxu0 0.0
  %456 = vmatpush.msra.mxu0 0.0
  %457 = vmatpush.msra.mxu0 0.0
  %458 = vmatpush.msra.mxu0 0.0
  %459 = vmatpush.msra.mxu0 %v439
  %460 = vmatmul.f32.gmra.mxu0 %v442
  %v461 = vpop.f32.mrf.mxu0
  %v462 = vadd.f32 0.0, %v461
  %463 = vdwg.mxu0
  %v465 = vsel %vm440, %v438, 0
  %467 = vmatpush.msra.mxu0 0.0
  %468 = vmatpush.msra.mxu0 0.0
  %469 = vmatpush.msra.mxu0 0.0
  %470 = vmatpush.msra.mxu0 0.0
  %471 = vmatpush.msra.mxu0 0.0
  %472 = vmatpush.msra.mxu0 0.0
  %473 = vmatpush.msra.mxu0 0.0
  %474 = vmatpush.msra.mxu0 0.0
  %475 = vmatpush.msra.mxu0 0.0
  %476 = vmatpush.msra.mxu0 0.0
  %477 = vmatpush.msra.mxu0 0.0
  %478 = vmatpush.msra.mxu0 0.0
  %479 = vmatpush.msra.mxu0 0.0
  %480 = vmatpush.msra.mxu0 0.0
  %481 = vmatpush.msra.mxu0 0.0
  %482 = vmatpush.msra.mxu0 %v439
  %483 = vmatmul.f32.gmra.mxu0 %v465
  %v484 = vpop.f32.mrf.mxu0
  %v485 = vadd.f32 0.0, %v484
  %486 = vdwg.mxu0
  %v487 = vperm.slane %v462, 0
  %v488 = vmul.f32 %v329, %v487
  %v489 = vmul.f32 %v330, %v487
  %v490 = vmul.f32 %v331, %v487
  %v491 = vmul.f32 %v332, %v487
  %v492 = vperm.slane %v485, 0
  %v493 = vadd.f32 %v488, %v492
  %v494 = vadd.f32 %v489, %v492
  %v495 = vadd.f32 %v490, %v492
  %v496 = vadd.f32 %v491, %v492
  %v497 = vmax.f32 %v493, 0.0
  %v498 = vmax.f32 %v494, 0.0
  %v499 = vmax.f32 %v495, 0.0
  %v500 = vmax.f32 %v496, 0.0
  %501 = vst [vmem:[#allocation2] sm:$0xff] 0.0
  %502 = vst [vmem:[#allocation2 + $0x8] sm:$0xff] 0.0
  %503 = vst [vmem:[#allocation2 + $0x10] sm:$0x3] 0.0
  %504 = vst [vmem:[#allocation2 + $0x18] sm:$0xff] 0.0
  %505 = vst [vmem:[#allocation2 + $0x20] sm:$0xff] 0.0
  %506 = vst [vmem:[#allocation2 + $0x28] sm:$0x3] 0.0
  %507 = vst [vmem:[#allocation2 + $0x1] sm:$0xff] %v497
  %508 = vst [vmem:[#allocation2 + $0x9] sm:$0xff] %v498
  %509 = vst [vmem:[#allocation2 + $0x19] sm:$0xff] %v499
  %510 = vst [vmem:[#allocation2 + $0x21] sm:$0xff] %v500
  %v511 = vld [vmem:[#allocation2] sm:$0xff]
  %v512 = vld [vmem:[#allocation2 + $0x8] sm:$0xff]
  %v513 = vld [vmem:[#allocation2 + $0x18] sm:$0xff]
  %v514 = vld [vmem:[#allocation2 + $0x20] sm:$0xff]
  %v515 = vpack.c.bf16 %v512, %v511
  %v516 = vpack.c.bf16 %v514, %v513
  %v517 = vld [vmem:[#allocation2 + $0x1] sm:$0xff]
  %v518 = vld [vmem:[#allocation2 + $0x9] sm:$0xff]
  %v519 = vld [vmem:[#allocation2 + $0x19] sm:$0xff]
  %v520 = vld [vmem:[#allocation2 + $0x21] sm:$0xff]
  %v521 = vpack.c.bf16 %v518, %v517
  %v522 = vpack.c.bf16 %v520, %v519
  %v523 = vld [vmem:[#allocation2 + $0x2] sm:$0xff]
  %v524 = vld [vmem:[#allocation2 + $0xa] sm:$0xff]
  %v525 = vld [vmem:[#allocation2 + $0x1a] sm:$0xff]
  %v526 = vld [vmem:[#allocation2 + $0x22] sm:$0xff]
  %v527 = vpack.c.bf16 %v524, %v523
  %v528 = vpack.c.bf16 %v526, %v525
  %v529 = vld [vmem:[%s5] sm:$0xf]
  %v530 = vld [vmem:[%s5 + $0x4] sm:$0xf]
  %v531 = vld [vmem:[%s5 + $0x8] sm:$0xf]
  %v532 = vld [vmem:[%s5 + $0xc] sm:$0xf]
  %v533 = vld [vmem:[%s5 + $0x10] sm:$0xf]
  %v534 = vld [vmem:[%s5 + $0x14] sm:$0xf]
  %v535 = vld [vmem:[%s5 + $0x18] sm:$0xf]
  %v536 = vld [vmem:[%s5 + $0x1c] sm:$0xf]
  %v537 = vld [vmem:[%s5 + $0x20] sm:$0xf]
  %v538 = vld [vmem:[%s5 + $0x24] sm:$0xf]
  %v539 = vld [vmem:[%s5 + $0x28] sm:$0xf]
  %v540 = vld [vmem:[%s5 + $0x2c] sm:$0xf]
  %v541 = vld [vmem:[%s5 + $0x30] sm:$0xf]
  %v542 = vld [vmem:[%s5 + $0x34] sm:$0xf]
  %v543 = vld [vmem:[%s5 + $0x38] sm:$0xf]
  %v544 = vld [vmem:[%s5 + $0x3c] sm:$0xf]
  %s545 = scalar_lea.vmem %s5, 64
  %v546 = vld [vmem:[%s545] sm:$0xf]
  %v547 = vld [vmem:[%s545 + $0x4] sm:$0xf]
  %v548 = vld [vmem:[%s545 + $0x8] sm:$0xf]
  %v549 = vld [vmem:[%s545 + $0xc] sm:$0xf]
  %v550 = vld [vmem:[%s545 + $0x10] sm:$0xf]
  %v551 = vld [vmem:[%s545 + $0x14] sm:$0xf]
  %v552 = vld [vmem:[%s545 + $0x18] sm:$0xf]
  %v553 = vld [vmem:[%s545 + $0x1c] sm:$0xf]
  %v554 = vld [vmem:[%s545 + $0x20] sm:$0xf]
  %v555 = vld [vmem:[%s545 + $0x24] sm:$0xf]
  %v556 = vld [vmem:[%s545 + $0x28] sm:$0xf]
  %v557 = vld [vmem:[%s545 + $0x2c] sm:$0xf]
  %v558 = vld [vmem:[%s545 + $0x30] sm:$0xf]
  %v559 = vld [vmem:[%s545 + $0x34] sm:$0xf]
  %v560 = vld [vmem:[%s545 + $0x38] sm:$0xf]
  %v561 = vld [vmem:[%s545 + $0x3c] sm:$0xf]
  %v578 = vunpack.c.l.b16 %v546
  %v579 = vunpack.c.l.b16 %v547
  %v580 = vunpack.c.l.b16 %v548
  %v581 = vunpack.c.l.b16 %v549
  %v582 = vunpack.c.l.b16 %v550
  %v583 = vunpack.c.l.b16 %v551
  %v584 = vunpack.c.l.b16 %v552
  %v585 = vunpack.c.l.b16 %v553
  %v586 = vunpack.c.l.b16 %v554
  %v587 = vunpack.c.l.b16 %v555
  %v588 = vunpack.c.l.b16 %v556
  %v589 = vunpack.c.l.b16 %v557
  %v590 = vunpack.c.l.b16 %v558
  %v591 = vunpack.c.l.b16 %v559
  %v592 = vunpack.c.l.b16 %v560
  %v593 = vunpack.c.l.b16 %v561
  %v594 = vpack.c.b16 %v579, %v578
  %v595 = vpack.c.b16 %v581, %v580
  %v596 = vpack.c.b16 %v583, %v582
  %v597 = vpack.c.b16 %v585, %v584
  %v598 = vpack.c.b16 %v587, %v586
  %v599 = vpack.c.b16 %v589, %v588
  %v600 = vpack.c.b16 %v591, %v590
  %v601 = vpack.c.b16 %v593, %v592
  %610 = vmatpush.bf16.msra.mxu0 %v601
  %611 = vmatpush.bf16.msra.mxu0 %v600
  %612 = vmatpush.bf16.msra.mxu0 %v599
  %613 = vmatpush.bf16.msra.mxu0 %v598
  %614 = vmatpush.bf16.msra.mxu0 %v597
  %615 = vmatpush.bf16.msra.mxu0 %v596
  %616 = vmatpush.bf16.msra.mxu0 %v595
  %617 = vmatpush.bf16.msra.mxu0 %v594
  %618 = vmatmul.bf16.gmra.mxu0 %v521
  %v619 = vpop.f32.mrf.mxu0
  %v620 = vadd.f32 0.0, %v619
  %v621 = vpop.f32.mrf.mxu0
  %v622 = vadd.f32 0.0, %v621
  %623 = vmatmul.bf16.gmra.mxu0 %v522
  %v624 = vpop.f32.mrf.mxu0
  %v625 = vadd.f32 0.0, %v624
  %v626 = vpop.f32.mrf.mxu0
  %v627 = vadd.f32 0.0, %v626
  %628 = vdwg.mxu0
  %v645 = vunpack.c.l.b16 %v529
  %v646 = vunpack.c.l.b16 %v530
  %v647 = vunpack.c.l.b16 %v531
  %v648 = vunpack.c.l.b16 %v532
  %v649 = vunpack.c.l.b16 %v533
  %v650 = vunpack.c.l.b16 %v534
  %v651 = vunpack.c.l.b16 %v535
  %v652 = vunpack.c.l.b16 %v536
  %v653 = vunpack.c.l.b16 %v537
  %v654 = vunpack.c.l.b16 %v538
  %v655 = vunpack.c.l.b16 %v539
  %v656 = vunpack.c.l.b16 %v540
  %v657 = vunpack.c.l.b16 %v541
  %v658 = vunpack.c.l.b16 %v542
  %v659 = vunpack.c.l.b16 %v543
  %v660 = vunpack.c.l.b16 %v544
  %v661 = vpack.c.b16 %v646, %v645
  %v662 = vpack.c.b16 %v648, %v647
  %v663 = vpack.c.b16 %v650, %v649
  %v664 = vpack.c.b16 %v652, %v651
  %v665 = vpack.c.b16 %v654, %v653
  %v666 = vpack.c.b16 %v656, %v655
  %v667 = vpack.c.b16 %v658, %v657
  %v668 = vpack.c.b16 %v660, %v659
  %677 = vmatpush.bf16.msra.mxu0 %v668
  %678 = vmatpush.bf16.msra.mxu0 %v667
  %679 = vmatpush.bf16.msra.mxu0 %v666
  %680 = vmatpush.bf16.msra.mxu0 %v665
  %681 = vmatpush.bf16.msra.mxu0 %v664
  %682 = vmatpush.bf16.msra.mxu0 %v663
  %683 = vmatpush.bf16.msra.mxu0 %v662
  %684 = vmatpush.bf16.msra.mxu0 %v661
  %685 = vmatmul.bf16.gmra.mxu0 %v515
  %v686 = vpop.f32.mrf.mxu0
  %v687 = vadd.f32 %v620, %v686
  %v688 = vpop.f32.mrf.mxu0
  %v689 = vadd.f32 %v622, %v688
  %690 = vmatmul.bf16.gmra.mxu0 %v516
  %v691 = vpop.f32.mrf.mxu0
  %v692 = vadd.f32 %v625, %v691
  %v693 = vpop.f32.mrf.mxu0
  %v694 = vadd.f32 %v627, %v693
  %695 = vdwg.mxu0
  %s696 = scalar_lea.vmem %s5, 128
  %v697 = vld [vmem:[%s696] sm:$0xf]
  %v698 = vld [vmem:[%s696 + $0x4] sm:$0xf]
  %v699 = vld [vmem:[%s696 + $0x8] sm:$0xf]
  %v700 = vld [vmem:[%s696 + $0xc] sm:$0xf]
  %v701 = vld [vmem:[%s696 + $0x10] sm:$0xf]
  %v702 = vld [vmem:[%s696 + $0x14] sm:$0xf]
  %v703 = vld [vmem:[%s696 + $0x18] sm:$0xf]
  %v704 = vld [vmem:[%s696 + $0x1c] sm:$0xf]
  %v705 = vld [vmem:[%s696 + $0x20] sm:$0xf]
  %v706 = vld [vmem:[%s696 + $0x24] sm:$0xf]
  %v707 = vld [vmem:[%s696 + $0x28] sm:$0xf]
  %v708 = vld [vmem:[%s696 + $0x2c] sm:$0xf]
  %v709 = vld [vmem:[%s696 + $0x30] sm:$0xf]
  %v710 = vld [vmem:[%s696 + $0x34] sm:$0xf]
  %v711 = vld [vmem:[%s696 + $0x38] sm:$0xf]
  %v712 = vld [vmem:[%s696 + $0x3c] sm:$0xf]
  %v729 = vunpack.c.l.b16 %v697
  %v730 = vunpack.c.l.b16 %v698
  %v731 = vunpack.c.l.b16 %v699
  %v732 = vunpack.c.l.b16 %v700
  %v733 = vunpack.c.l.b16 %v701
  %v734 = vunpack.c.l.b16 %v702
  %v735 = vunpack.c.l.b16 %v703
  %v736 = vunpack.c.l.b16 %v704
  %v737 = vunpack.c.l.b16 %v705
  %v738 = vunpack.c.l.b16 %v706
  %v739 = vunpack.c.l.b16 %v707
  %v740 = vunpack.c.l.b16 %v708
  %v741 = vunpack.c.l.b16 %v709
  %v742 = vunpack.c.l.b16 %v710
  %v743 = vunpack.c.l.b16 %v711
  %v744 = vunpack.c.l.b16 %v712
  %v745 = vpack.c.b16 %v730, %v729
  %v746 = vpack.c.b16 %v732, %v731
  %v747 = vpack.c.b16 %v734, %v733
  %v748 = vpack.c.b16 %v736, %v735
  %v749 = vpack.c.b16 %v738, %v737
  %v750 = vpack.c.b16 %v740, %v739
  %v751 = vpack.c.b16 %v742, %v741
  %v752 = vpack.c.b16 %v744, %v743
  %761 = vmatpush.bf16.msra.mxu0 %v752
  %762 = vmatpush.bf16.msra.mxu0 %v751
  %763 = vmatpush.bf16.msra.mxu0 %v750
  %764 = vmatpush.bf16.msra.mxu0 %v749
  %765 = vmatpush.bf16.msra.mxu0 %v748
  %766 = vmatpush.bf16.msra.mxu0 %v747
  %767 = vmatpush.bf16.msra.mxu0 %v746
  %768 = vmatpush.bf16.msra.mxu0 %v745
  %769 = vmatmul.bf16.gmra.mxu0 %v527
  %v770 = vpop.f32.mrf.mxu0
  %v771 = vadd.f32 0.0, %v770
  %v772 = vpop.f32.mrf.mxu0
  %v773 = vadd.f32 0.0, %v772
  %774 = vmatmul.bf16.gmra.mxu0 %v528
  %v775 = vpop.f32.mrf.mxu0
  %v776 = vadd.f32 0.0, %v775
  %v777 = vpop.f32.mrf.mxu0
  %v778 = vadd.f32 0.0, %v777
  %779 = vdwg.mxu0
  %v780 = vadd.f32 %v687, %v771
  %v781 = vadd.f32 %v689, %v773
  %v782 = vadd.f32 %v692, %v776
  %v783 = vadd.f32 %v694, %v778
  %v784 = vld [vmem:[%s6] sm:$0x1]
  %v786 = vperm.slane %v784, 0
  %v788 = vadd.f32 %v780, %v786
  %v789 = vadd.f32 %v781, %v786
  %v790 = vadd.f32 %v782, %v786
  %v791 = vadd.f32 %v783, %v786
  %v792 = vadd.f32 %v788, %v789
  %v793 = vadd.f32 %v792, %v790
  %v794 = vadd.f32 %v793, %v791
  %v795 = vrot.slane %v794, 4
  %v796 = vadd.f32 %v794, %v795
  %v797 = vrot.slane %v796, 2
  %v798 = vadd.f32 %v796, %v797
  %v799 = vrot.slane %v798, 1
  %v800 = vadd.f32 %v798, %v799
  %v801 = vmul.f32 %v788, %v788
  %v802 = vmul.f32 %v789, %v789
  %v803 = vmul.f32 %v790, %v790
  %v804 = vmul.f32 %v791, %v791
  %v805 = vadd.f32 %v801, %v802
  %v806 = vadd.f32 %v805, %v803
  %v807 = vadd.f32 %v806, %v804
  %v808 = vrot.slane %v807, 4
  %v809 = vadd.f32 %v807, %v808
  %v810 = vrot.slane %v809, 2
  %v811 = vadd.f32 %v809, %v810
  %v812 = vrot.slane %v811, 1
  %v813 = vadd.f32 %v811, %v812
  %v814 = vld [vmem:[%s9] sm:$0xff]
  %v815 = vld [vmem:[%s9 + $0x8] sm:$0xff]
  %v816 = vld [vmem:[%s9 + $0x10] sm:$0xff]
  %v817 = vld [vmem:[%s9 + $0x18] sm:$0xff]
  %v818 = vld [vmem:[%s9 + $0x20] sm:$0xff]
  %v819 = vld [vmem:[%s9 + $0x28] sm:$0xff]
  %v820 = vld [vmem:[%s9 + $0x30] sm:$0xff]
  %v821 = vld [vmem:[%s9 + $0x38] sm:$0xff]
  %v822 = vld [vmem:[%s9 + $0x40] sm:$0xff]
  %v823 = vld [vmem:[%s9 + $0x48] sm:$0xff]
  %v824 = vld [vmem:[%s9 + $0x50] sm:$0xff]
  %v825 = vld [vmem:[%s9 + $0x58] sm:$0xff]
  %v826 = vld [vmem:[%s9 + $0x60] sm:$0xff]
  %v827 = vld [vmem:[%s9 + $0x68] sm:$0xff]
  %v828 = vld [vmem:[%s9 + $0x70] sm:$0xff]
  %v829 = vld [vmem:[%s9 + $0x78] sm:$0xff]
  %830 = vmatpush.msra.mxu0 %v829
  %831 = vmatpush.msra.mxu0 %v828
  %832 = vmatpush.msra.mxu0 %v827
  %833 = vmatpush.msra.mxu0 %v826
  %834 = vmatpush.msra.mxu0 %v825
  %835 = vmatpush.msra.mxu0 %v824
  %836 = vmatpush.msra.mxu0 %v823
  %837 = vmatpush.msra.mxu0 %v822
  %838 = vmatpush.msra.mxu0 %v821
  %839 = vmatpush.msra.mxu0 %v820
  %840 = vmatpush.msra.mxu0 %v819
  %841 = vmatpush.msra.mxu0 %v818
  %842 = vmatpush.msra.mxu0 %v817
  %843 = vmatpush.msra.mxu0 %v816
  %844 = vmatpush.msra.mxu0 %v815
  %845 = vmatpush.msra.mxu0 %v814
  %846 = vmatmul.f32.gmra.mxu0 %v800
  %v847 = vpop.f32.mrf.mxu0
  %v848 = vadd.f32 0.0, %v847
  %849 = vdwg.mxu0
  %850 = vmatpush.msra.mxu0 %v829
  %851 = vmatpush.msra.mxu0 %v828
  %852 = vmatpush.msra.mxu0 %v827
  %853 = vmatpush.msra.mxu0 %v826
  %854 = vmatpush.msra.mxu0 %v825
  %855 = vmatpush.msra.mxu0 %v824
  %856 = vmatpush.msra.mxu0 %v823
  %857 = vmatpush.msra.mxu0 %v822
  %858 = vmatpush.msra.mxu0 %v821
  %859 = vmatpush.msra.mxu0 %v820
  %860 = vmatpush.msra.mxu0 %v819
  %861 = vmatpush.msra.mxu0 %v818
  %862 = vmatpush.msra.mxu0 %v817
  %863 = vmatpush.msra.mxu0 %v816
  %864 = vmatpush.msra.mxu0 %v815
  %865 = vmatpush.msra.mxu0 %v814
  %866 = vmatmul.f32.gmra.mxu0 %v813
  %v867 = vpop.f32.mrf.mxu0
  %v868 = vadd.f32 0.0, %v867
  %869 = vdwg.mxu0
  %v870 = vmul.f32 %v848, %v417
  %v871 = vmul.f32 %v868, %v417
  %v872 = vmul.f32 %v870, %v870
  %v873 = vsub.f32 %v871, %v872
  %v874 = vmax.f32 %v873, 0.0
  %v875 = vld [vmem:[%s7] sm:$0x1]
  %v876 = vadd.f32 %v874, 1e-05
  %v877 = vrsqrt.pop %v876
  %v878 = vmul.f32 %v877, %v876
  %v879 = vmul.f32 %v878, %v877
  %v880 = vmul.f32 0.5, %v879
  %v881 = vsub.f32 1.5, %v880
  %v882 = vmul.f32 %v877, %v881
  %vm883 = vweird.f32 %v876
  %vm884 = vweird.f32 %v877
  %vm885 = vmor %vm883, %vm884
  %v886 = vsel %vm885, %v877, %v882
  %v887 = vmul.f32 %v875, %v886
  %v888 = vld [vmem:[%s8] sm:$0x1]
  %v889 = vmul.f32 %v870, %v887
  %v890 = vsub.f32 %v888, %v889
  %v891 = vld [vmem:[%s10] sm:$0xff]
  %v893 = vsel %vm440, %v887, 0
  %895 = vmatpush.msra.mxu0 0.0
  %896 = vmatpush.msra.mxu0 0.0
  %897 = vmatpush.msra.mxu0 0.0
  %898 = vmatpush.msra.mxu0 0.0
  %899 = vmatpush.msra.mxu0 0.0
  %900 = vmatpush.msra.mxu0 0.0
  %901 = vmatpush.msra.mxu0 0.0
  %902 = vmatpush.msra.mxu0 0.0
  %903 = vmatpush.msra.mxu0 0.0
  %904 = vmatpush.msra.mxu0 0.0
  %905 = vmatpush.msra.mxu0 0.0
  %906 = vmatpush.msra.mxu0 0.0
  %907 = vmatpush.msra.mxu0 0.0
  %908 = vmatpush.msra.mxu0 0.0
  %909 = vmatpush.msra.mxu0 0.0
  %910 = vmatpush.msra.mxu0 %v891
  %911 = vmatmul.f32.gmra.mxu0 %v893
  %v912 = vpop.f32.mrf.mxu0
  %v913 = vadd.f32 0.0, %v912
  %914 = vdwg.mxu0
  %v916 = vsel %vm440, %v890, 0
  %918 = vmatpush.msra.mxu0 0.0
  %919 = vmatpush.msra.mxu0 0.0
  %920 = vmatpush.msra.mxu0 0.0
  %921 = vmatpush.msra.mxu0 0.0
  %922 = vmatpush.msra.mxu0 0.0
  %923 = vmatpush.msra.mxu0 0.0
  %924 = vmatpush.msra.mxu0 0.0
  %925 = vmatpush.msra.mxu0 0.0
  %926 = vmatpush.msra.mxu0 0.0
  %927 = vmatpush.msra.mxu0 0.0
  %928 = vmatpush.msra.mxu0 0.0
  %929 = vmatpush.msra.mxu0 0.0
  %930 = vmatpush.msra.mxu0 0.0
  %931 = vmatpush.msra.mxu0 0.0
  %932 = vmatpush.msra.mxu0 0.0
  %933 = vmatpush.msra.mxu0 %v891
  %934 = vmatmul.f32.gmra.mxu0 %v916
  %v935 = vpop.f32.mrf.mxu0
  %v936 = vadd.f32 0.0, %v935
  %937 = vdwg.mxu0
  %v938 = vperm.slane %v913, 0
  %v939 = vmul.f32 %v788, %v938
  %v940 = vmul.f32 %v789, %v938
  %v941 = vmul.f32 %v790, %v938
  %v942 = vmul.f32 %v791, %v938
  %v943 = vperm.slane %v936, 0
  %v944 = vadd.f32 %v939, %v943
  %v945 = vadd.f32 %v940, %v943
  %v946 = vadd.f32 %v941, %v943
  %v947 = vadd.f32 %v942, %v943
  %v948 = vmax.f32 %v944, 0.0
  %v949 = vmax.f32 %v945, 0.0
  %v950 = vmax.f32 %v946, 0.0
  %v951 = vmax.f32 %v947, 0.0
  %952 = vst [vmem:[%s12] sm:$0xff] %v948
  %953 = vst [vmem:[%s12 + $0x8] sm:$0xff] %v949
  %954 = vst [vmem:[%s12 + $0x10] sm:$0xff] %v950
  %955 = vst [vmem:[%s12 + $0x18] sm:$0xff] %v951
  %v956 = vld [vmem:[%s11] sm:$0xff]
  %v957 = vld [vmem:[%s11 + $0x8] sm:$0xff]
  %v958 = vld [vmem:[%s11 + $0x10] sm:$0xff]
  %v959 = vld [vmem:[%s11 + $0x18] sm:$0xff]
  %v964 = vrot.slane %v948, 2
  %v965 = vrot.slane %v948, 4
  %v966 = vrot.slane %v948, 6
  %v967 = vrot.slane %v949, 2
  %v968 = vrot.slane %v949, 4
  %v969 = vrot.slane %v949, 6
  %v970 = vrot.slane %v950, 2
  %v971 = vrot.slane %v950, 4
  %v972 = vrot.slane %v950, 6
  %v973 = vrot.slane %v951, 2
  %v974 = vrot.slane %v951, 4
  %v975 = vrot.slane %v951, 6
  %v988 = vrot.slane %v956, 2
  %v989 = vrot.slane %v956, 4
  %v990 = vrot.slane %v956, 6
  %v991 = vrot.slane %v957, 2
  %v992 = vrot.slane %v957, 4
  %v993 = vrot.slane %v957, 6
  %v994 = vrot.slane %v958, 2
  %v995 = vrot.slane %v958, 4
  %v996 = vrot.slane %v958, 6
  %v997 = vrot.slane %v959, 2
  %v998 = vrot.slane %v959, 4
  %v999 = vrot.slane %v959, 6
  %v1000 = vrot.slane %v948, 7
  %v1001 = vrot.slane %v964, 7
  %v1002 = vrot.slane %v965, 7
  %v1003 = vrot.slane %v966, 7
  %v1004 = vrot.slane %v949, 7
  %v1005 = vrot.slane %v967, 7
  %v1006 = vrot.slane %v968, 7
  %v1007 = vrot.slane %v969, 7
  %v1008 = vrot.slane %v950, 7
  %v1009 = vrot.slane %v970, 7
  %v1010 = vrot.slane %v971, 7
  %v1011 = vrot.slane %v972, 7
  %v1012 = vrot.slane %v951, 7
  %v1013 = vrot.slane %v973, 7
  %v1014 = vrot.slane %v974, 7
  %v1015 = vrot.slane %v975, 7
  %vm1032 = vcmp.gt.f32.partialorder %v948, %v1000
  %vm1033 = vcmp.gt.f32.partialorder %v964, %v1001
  %vm1034 = vcmp.gt.f32.partialorder %v965, %v1002
  %vm1035 = vcmp.gt.f32.partialorder %v966, %v1003
  %vm1036 = vcmp.gt.f32.partialorder %v949, %v1004
  %vm1037 = vcmp.gt.f32.partialorder %v967, %v1005
  %vm1038 = vcmp.gt.f32.partialorder %v968, %v1006
  %vm1039 = vcmp.gt.f32.partialorder %v969, %v1007
  %vm1040 = vcmp.gt.f32.partialorder %v950, %v1008
  %vm1041 = vcmp.gt.f32.partialorder %v970, %v1009
  %vm1042 = vcmp.gt.f32.partialorder %v971, %v1010
  %vm1043 = vcmp.gt.f32.partialorder %v972, %v1011
  %vm1044 = vcmp.gt.f32.partialorder %v951, %v1012
  %vm1045 = vcmp.gt.f32.partialorder %v973, %v1013
  %vm1046 = vcmp.gt.f32.partialorder %v974, %v1014
  %vm1047 = vcmp.gt.f32.partialorder %v975, %v1015
  %v1048 = vsel %vm1032, %v948, %v1000
  %v1049 = vsel %vm1033, %v964, %v1001
  %v1050 = vsel %vm1034, %v965, %v1002
  %v1051 = vsel %vm1035, %v966, %v1003
  %v1052 = vsel %vm1036, %v949, %v1004
  %v1053 = vsel %vm1037, %v967, %v1005
  %v1054 = vsel %vm1038, %v968, %v1006
  %v1055 = vsel %vm1039, %v969, %v1007
  %v1056 = vsel %vm1040, %v950, %v1008
  %v1057 = vsel %vm1041, %v970, %v1009
  %v1058 = vsel %vm1042, %v971, %v1010
  %v1059 = vsel %vm1043, %v972, %v1011
  %v1060 = vsel %vm1044, %v951, %v1012
  %v1061 = vsel %vm1045, %v973, %v1013
  %v1062 = vsel %vm1046, %v974, %v1014
  %v1063 = vsel %vm1047, %v975, %v1015
  %1064 = vst [vmem:[%s13 - $0x1] sm:$0x2] %v1048
  %1065 = vst [vmem:[%s13] sm:$0x2] %v1049
  %1066 = vst [vmem:[%s13 + $0x1] sm:$0x2] %v1050
  %1067 = vst [vmem:[%s13 + $0x2] sm:$0x2] %v1051
  %1068 = vst [vmem:[%s13 + $0x3] sm:$0x2] %v1052
  %1069 = vst [vmem:[%s13 + $0x4] sm:$0x2] %v1053
  %1070 = vst [vmem:[%s13 + $0x5] sm:$0x2] %v1054
  %1071 = vst [vmem:[%s13 + $0x6] sm:$0x2] %v1055
  %1072 = vst [vmem:[%s13 + $0x7] sm:$0x2] %v1056
  %1073 = vst [vmem:[%s13 + $0x8] sm:$0x2] %v1057
  %1074 = vst [vmem:[%s13 + $0x9] sm:$0x2] %v1058
  %1075 = vst [vmem:[%s13 + $0xa] sm:$0x2] %v1059
  %1076 = vst [vmem:[%s13 + $0xb] sm:$0x2] %v1060
  %1077 = vst [vmem:[%s13 + $0xc] sm:$0x2] %v1061
  %1078 = vst [vmem:[%s13 + $0xd] sm:$0x2] %v1062
  %1079 = vst [vmem:[%s13 + $0xe] sm:$0x2] %v1063
  %v1080 = vrot.slane %v956, 7
  %v1081 = vrot.slane %v988, 7
  %v1082 = vrot.slane %v989, 7
  %v1083 = vrot.slane %v990, 7
  %v1084 = vrot.slane %v957, 7
  %v1085 = vrot.slane %v991, 7
  %v1086 = vrot.slane %v992, 7
  %v1087 = vrot.slane %v993, 7
  %v1088 = vrot.slane %v958, 7
  %v1089 = vrot.slane %v994, 7
  %v1090 = vrot.slane %v995, 7
  %v1091 = vrot.slane %v996, 7
  %v1092 = vrot.slane %v959, 7
  %v1093 = vrot.slane %v997, 7
  %v1094 = vrot.slane %v998, 7
  %v1095 = vrot.slane %v999, 7
  %v1096 = vsel %vm1032, %v956, %v1080
  %v1097 = vsel %vm1033, %v988, %v1081
  %v1098 = vsel %vm1034, %v989, %v1082
  %v1099 = vsel %vm1035, %v990, %v1083
  %v1100 = vsel %vm1036, %v957, %v1084
  %v1101 = vsel %vm1037, %v991, %v1085
  %v1102 = vsel %vm1038, %v992, %v1086
  %v1103 = vsel %vm1039, %v993, %v1087
  %v1104 = vsel %vm1040, %v958, %v1088
  %v1105 = vsel %vm1041, %v994, %v1089
  %v1106 = vsel %vm1042, %v995, %v1090
  %v1107 = vsel %vm1043, %v996, %v1091
  %v1108 = vsel %vm1044, %v959, %v1092
  %v1109 = vsel %vm1045, %v997, %v1093
  %v1110 = vsel %vm1046, %v998, %v1094
  %v1111 = vsel %vm1047, %v999, %v1095
  %1112 = vst [vmem:[%s14 - $0x1] sm:$0x2] %v1096
  %1113 = vst [vmem:[%s14] sm:$0x2] %v1097
  %1114 = vst [vmem:[%s14 + $0x1] sm:$0x2] %v1098
  %1115 = vst [vmem:[%s14 + $0x2] sm:$0x2] %v1099
  %1116 = vst [vmem:[%s14 + $0x3] sm:$0x2] %v1100
  %1117 = vst [vmem:[%s14 + $0x4] sm:$0x2] %v1101
  %1118 = vst [vmem:[%s14 + $0x5] sm:$0x2] %v1102
  %1119 = vst [vmem:[%s14 + $0x6] sm:$0x2] %v1103
  %1120 = vst [vmem:[%s14 + $0x7] sm:$0x2] %v1104
  %1121 = vst [vmem:[%s14 + $0x8] sm:$0x2] %v1105
  %1122 = vst [vmem:[%s14 + $0x9] sm:$0x2] %v1106
  %1123 = vst [vmem:[%s14 + $0xa] sm:$0x2] %v1107
  %1124 = vst [vmem:[%s14 + $0xb] sm:$0x2] %v1108
  %1125 = vst [vmem:[%s14 + $0xc] sm:$0x2] %v1109
  %1126 = vst [vmem:[%s14 + $0xd] sm:$0x2] %v1110
  %1127 = vst [vmem:[%s14 + $0xe] sm:$0x2] %v1111
  // Predicated region
  $region50: #{encoder_block_forward.1} parent=0 // pred_check
    _
  $region51: #{encoder_block_forward.1} parent=0 // pred_check_branch
    %1129 = sbr.rel (0) target = $region53
  $region52: #{encoder_block_forward.1} parent=0 // pred_region
    _
  $region53: #{encoder_block_forward.1} parent=0 // pred_fallthru
    _
  // Predicated region
  $region54: #{encoder_block_forward.1} parent=0 // pred_check
    _
  $region55: #{encoder_block_forward.1} parent=0 // pred_check_branch
    %1131 = sbr.rel (0) target = $region57
  $region56: #{encoder_block_forward.1} parent=0 // pred_region
    _
  $region57: #{encoder_block_forward.1} parent=0 // pred_fallthru
    _
  // Predicated region
  $region58: #{encoder_block_forward.1} parent=0 // pred_check
    _
  $region59: #{encoder_block_forward.1} parent=0 // pred_check_branch
    %1133 = sbr.rel (0) target = $region61
  $region60: #{encoder_block_forward.1} parent=0 // pred_region
    _
  $region61: #{encoder_block_forward.1} parent=0 // pred_fallthru
    _
  // Predicated region
  $region62: #{encoder_block_forward.1} parent=0 // pred_check
    _
  $region63: #{encoder_block_forward.1} parent=0 // pred_check_branch
    %1135 = sbr.rel (0) target = $region65
  $region64: #{encoder_block_forward.1} parent=0 // pred_region
    _
  $region65: #{encoder_block_forward.1} parent=0 // pred_fallthru
    _
  // Predicated region
  $region66: #{encoder_block_forward.1} parent=0 // pred_check
    _
  $region67: #{encoder_block_forward.1} parent=0 // pred_check_branch
    %1137 = sbr.rel (0) target = $region69
  $region68: #{encoder_block_forward.1} parent=0 // pred_region
    _
  $region69: #{encoder_block_forward.1} parent=0 // pred_fallthru
    _
  // Predicated region
  $region70: #{encoder_block_forward.1} parent=0 // pred_check
    _
  $region71: #{encoder_block_forward.1} parent=0 // pred_check_branch
    %1139 = sbr.rel (0) target = $region73
  $region72: #{encoder_block_forward.1} parent=0 // pred_region
    _
  $region73: #{encoder_block_forward.1} parent=0 // pred_fallthru
    _

</llo_original>
